<compile_context>
chip_gen: v7x
topology: tpu7x:2x2x1
jax: 0.10.0
libtpu: 0.0.40
codegen_flags: <defaults>
</compile_context>

<pallas_src>
import jax
import jax.numpy as jnp
from jax.experimental import pallas as pl
from jax.experimental.pallas import tpu as pltpu


def gcn_kernel(adjt_ref, xs_ref, ddst_ref, m_ref,
               w1_ref, b1_ref, w2_ref, b2_ref,
               out_ref, adjbd_ref):
    """One block of `gb` graphs packed block-diagonally into nt = gb*n nodes.

    adjt_ref : (1, gb, n, n) bf16   A^T per graph ([dst, src], exact 0/1)
    xs_ref   : (1, nt, fp)   bf16   D_out^{-1/2} X  (feature dim zero-padded)
    ddst_ref : (1, nt, 1)    f32    D_in^{-1/2} per destination node
    m_ref    : (1, nt, 1)    f32    folded readout weights (1/n * colsum of A_hat)
    w1/b1/w2/b2 : weights (bf16) / biases (f32)
    out_ref  : (gb, h2)      f32
    adjbd_ref: (nt, nt)      bf16   VMEM scratch for the block-diagonal A^T
    """
    gb = adjt_ref.shape[1]
    n = adjt_ref.shape[2]

    # ---- expand compact adjacency into a block-diagonal VMEM tile ----
    # Re-zero every step: cheap (one pass over 32 KiB) and correct under megacore
    # sharding of the "parallel" grid axis (scratch is per-core, not per-step-0).
    adjbd_ref[...] = jnp.zeros_like(adjbd_ref)
    for k in range(gb):  # static python loop, gb is small
        adjbd_ref[k * n:(k + 1) * n, k * n:(k + 1) * n] = adjt_ref[0, k]

    adjbd = adjbd_ref[...]                       # (nt, nt) bf16, block-diag A^T
    xs = xs_ref[0]                               # (nt, fp) bf16, already D_src-scaled

    # ---- layer 1: aggregate-then-project (Fin < H1) ----
    # A_hat @ X = D_dst^{-1/2} (A^T (D_src^{-1/2} X)); d_dst applied in f32 post-acc.
    ax = jnp.dot(adjbd, xs, preferred_element_type=jnp.float32)       # (nt, fp) f32
    ax = ddst_ref[0] * ax                                             # f32 row scale
    h1 = jnp.dot(ax.astype(jnp.bfloat16), w1_ref[...],
                 preferred_element_type=jnp.float32) + b1_ref[...]    # (nt, h1)
    h1 = jnp.maximum(h1, 0.0)

    # ---- layer 2: projection only (its aggregation is folded into the readout) ----
    hw2 = jnp.dot(h1.astype(jnp.bfloat16), w2_ref[...],
                  preferred_element_type=jnp.float32)                 # (nt, h2)

    # ---- readout: mean_nodes folded into the final aggregation, segment-sum ----
    #   out[g, :] = sum_{j in graph g} m[j] * hw2[j, :] + b2
    scaled = m_ref[0] * hw2                                           # (nt, h2) f32
    out_ref[...] = scaled.reshape(gb, n, scaled.shape[-1]).sum(axis=1) + b2_ref[...]


def gcn_forward(adj, x, w1, b1, w2, b2, *, graphs_per_block=8):
    """adj: (G, N, N) raw 0/1 adjacency (adj[g, src, dst]); x: (G, N, Fin)."""
    g, n, _ = adj.shape
    f_in = x.shape[-1]
    h1 = w1.shape[1]
    h2 = w2.shape[1]

    gb = graphs_per_block
    assert g % gb == 0, "pad the batch to a multiple of graphs_per_block"
    nb = g // gb
    nt = gb * n                                      # nodes per super-block

    adj_f = adj.astype(jnp.float32)

    # ---- hoisted DGL 'both' normalization (f32, exact; degrees clamped to >= 1) ----
    out_deg = jnp.sum(adj_f, axis=2)                           # (G, N) src out-degree
    in_deg = jnp.sum(adj_f, axis=1)                            # (G, N) dst in-degree
    d_src = jax.lax.rsqrt(jnp.maximum(out_deg, 1.0))           # (G, N)
    d_dst = jax.lax.rsqrt(jnp.maximum(in_deg, 1.0))            # (G, N)
    # Folded readout weight: m[g, j] = (1/N) d_src[g, j] * sum_i d_dst[g, i] A[g, j, i]
    m = d_src * jnp.einsum('gji,gi->gj', adj_f, d_dst) * (1.0 / n)

    # ---- feature stream: pad Fin -> lane multiple, fold d_src, cast to bf16 ----
    fp = ((f_in + 127) // 128) * 128
    x_p = jnp.pad(x.astype(jnp.float32), ((0, 0), (0, 0), (0, fp - f_in)))
    xs = (d_src[..., None] * x_p).astype(jnp.bfloat16).reshape(nb, nt, fp)

    # ---- compact, transposed, bf16 adjacency: (nb, gb, n, n), [dst, src] ----
    adjt_c = jnp.swapaxes(adj_f, 1, 2).astype(jnp.bfloat16).reshape(nb, gb, n, n)

    d_dst_b = d_dst.astype(jnp.float32).reshape(nb, nt, 1)
    m_b = m.astype(jnp.float32).reshape(nb, nt, 1)

    w1_p = jnp.pad(w1, ((0, fp - f_in), (0, 0))).astype(jnp.bfloat16)
    w2_b = w2.astype(jnp.bfloat16)
    b1_b = b1.reshape(1, h1).astype(jnp.float32)
    b2_b = b2.reshape(1, h2).astype(jnp.float32)

    return pl.pallas_call(
        gcn_kernel,
        out_shape=jax.ShapeDtypeStruct((g, h2), jnp.float32),
        grid_spec=pltpu.PrefetchScalarGridSpec(
            num_scalar_prefetch=0,
            grid=(nb,),
            in_specs=[
                pl.BlockSpec((1, gb, n, n), lambda b: (b, 0, 0, 0)),  # compact A^T (bf16)
                pl.BlockSpec((1, nt, fp), lambda b: (b, 0, 0)),       # D_src^{-1/2} X (bf16)
                pl.BlockSpec((1, nt, 1), lambda b: (b, 0, 0)),        # d_dst (f32)
                pl.BlockSpec((1, nt, 1), lambda b: (b, 0, 0)),        # m (f32)
                # constant-index blocks: fetched once, not re-streamed per grid step
                pl.BlockSpec((fp, h1), lambda b: (0, 0)),             # W1 (bf16)
                pl.BlockSpec((1, h1), lambda b: (0, 0)),              # b1
                pl.BlockSpec((h1, h2), lambda b: (0, 0)),             # W2 (bf16)
                pl.BlockSpec((1, h2), lambda b: (0, 0)),              # b2
            ],
            out_specs=pl.BlockSpec((gb, h2), lambda b: (b, 0)),       # dense (gb, h2) store
            scratch_shapes=[pltpu.VMEM((nt, nt), jnp.bfloat16)],      # block-diag A^T
        ),
        compiler_params=pltpu.CompilerParams(
            dimension_semantics=("parallel",)),
    )(adjt_c, xs, d_dst_b, m_b, w1_p, b1_b, w2_b, b2_b)


if __name__ == "__main__":
    # Small deterministic problem; module dims kept: in_dim=74, hidden1=256, hidden2=128.
    G = 16           # graphs in the batch (2 super-blocks of 8 -> grid of 2, both v7x TCs)
    N = 16           # nodes per graph
    IN_DIM = 74
    H1 = 256
    H2 = 128

    key = jax.random.PRNGKey(0)
    k_feat, k_adj, k_w1, k_w2 = jax.random.split(key, 4)

    x = jax.random.normal(k_feat, (G, N, IN_DIM), dtype=jnp.float32)

    # Random directed adjacency per graph (no self loops).
    adj = (jax.random.uniform(k_adj, (G, N, N)) < 0.3).astype(jnp.float32)
    adj = adj * (1.0 - jnp.eye(N, dtype=jnp.float32))

    def xavier_uniform(k, fan_in, fan_out):
        limit = jnp.sqrt(6.0 / (fan_in + fan_out))
        return jax.random.uniform(k, (fan_in, fan_out), jnp.float32, -limit, limit)

    w1 = xavier_uniform(k_w1, IN_DIM, H1)
    b1 = jnp.zeros((1, H1), dtype=jnp.float32)
    w2 = xavier_uniform(k_w2, H1, H2)
    b2 = jnp.zeros((1, H2), dtype=jnp.float32)

    out = jax.jit(gcn_forward)(adj, x, w1, b1, w2, b2)
    out = jax.block_until_ready(out)

    # Pure-JAX f32 reference (unfused, per graph) for a semantics check.
    def ref_one(adj_g, x_g):
        out_deg = jnp.clip(jnp.sum(adj_g, axis=1), 1.0, None)
        in_deg = jnp.clip(jnp.sum(adj_g, axis=0), 1.0, None)
        d_src = 1.0 / jnp.sqrt(out_deg)
        d_dst = 1.0 / jnp.sqrt(in_deg)
        a_hat = d_dst[:, None] * adj_g.T * d_src[None, :]
        h = jnp.maximum(a_hat @ (x_g @ w1) + b1, 0.0)
        h = a_hat @ (h @ w2) + b2
        return jnp.mean(h, axis=0)

    ref = jax.vmap(ref_one)(adj, x)

    assert out.shape == (G, H2)
    # bf16 MXU operands -> slightly loosened tolerance vs the f32 reference.
    assert jnp.allclose(out, ref, atol=2e-2, rtol=2e-2), float(jnp.max(jnp.abs(out - ref)))

    print("KERNEL_OK")
</pallas_src>

<mosaic_0001>
module attributes {stable_mosaic.version = 11 : i64} {
  func.func @gcn_kernel(%arg0: i32, %arg1: memref<1x8x16x16xbf16, #tpu.memory_space<vmem>>, %arg2: memref<1x128x128xbf16, #tpu.memory_space<vmem>>, %arg3: memref<1x128x1xf32, #tpu.memory_space<vmem>>, %arg4: memref<1x128x1xf32, #tpu.memory_space<vmem>>, %arg5: memref<128x256xbf16, #tpu.memory_space<vmem>>, %arg6: memref<1x256xf32, #tpu.memory_space<vmem>>, %arg7: memref<256x128xbf16, #tpu.memory_space<vmem>>, %arg8: memref<1x128xf32, #tpu.memory_space<vmem>>, %arg9: memref<8x128xf32, #tpu.memory_space<vmem>>, %arg10: memref<128x128xbf16, #tpu.memory_space<vmem>>) attributes {dimension_semantics = [#tpu.dimension_semantics<parallel>], iteration_bounds = array<i64: 2>, scalar_prefetch = 0 : i64, scratch_operands = 1 : i64, tpu.core_type = #tpu.core_type<tc>, window_params = [{transform_indices = @transform_0, window_bounds = array<i64: 1, 8, 16, 16>}, {transform_indices = @transform_1, window_bounds = array<i64: 1, 128, 128>}, {transform_indices = @transform_2, window_bounds = array<i64: 1, 128, 1>}, {transform_indices = @transform_3, window_bounds = array<i64: 1, 128, 1>}, {pipeline_mode = #tpu.pipeline_mode<synchronous>, transform_indices = @transform_4, window_bounds = array<i64: 128, 256>}, {pipeline_mode = #tpu.pipeline_mode<synchronous>, transform_indices = @transform_5, window_bounds = array<i64: 1, 256>}, {pipeline_mode = #tpu.pipeline_mode<synchronous>, transform_indices = @transform_6, window_bounds = array<i64: 256, 128>}, {pipeline_mode = #tpu.pipeline_mode<synchronous>, transform_indices = @transform_7, window_bounds = array<i64: 1, 128>}, {transform_indices = @transform_8, window_bounds = array<i64: 8, 128>}]} {
    %cst = arith.constant 0.000000e+00 : bf16
    %0 = vector.broadcast %cst : bf16 to vector<128x128xbf16>
    %c0 = arith.constant 0 : index
    %c0_0 = arith.constant 0 : index
    %1 = vector.load %arg10[%c0, %c0_0] : memref<128x128xbf16, #tpu.memory_space<vmem>>, vector<128x128xbf16>
    tpu.vector_store %arg10[%c0, %c0_0], %0 {strides = array<i32>} : memref<128x128xbf16, #tpu.memory_space<vmem>>, vector<128x128xbf16>,
    %c0_1 = arith.constant 0 : index
    %c0_2 = arith.constant 0 : index
    %c0_3 = arith.constant 0 : index
    %c0_4 = arith.constant 0 : index
    %2 = vector.load %arg1[%c0_1, %c0_2, %c0_3, %c0_4] : memref<1x8x16x16xbf16, #tpu.memory_space<vmem>>, vector<1x1x16x16xbf16>
    %3 = vector.shape_cast %2 : vector<1x1x16x16xbf16> to vector<16x16xbf16>
    %c0_5 = arith.constant 0 : index
    %c0_6 = arith.constant 0 : index
    %4 = vector.load %arg10[%c0_5, %c0_6] : memref<128x128xbf16, #tpu.memory_space<vmem>>, vector<16x16xbf16>
    tpu.vector_store %arg10[%c0_5, %c0_6], %3 {strides = array<i32>} : memref<128x128xbf16, #tpu.memory_space<vmem>>, vector<16x16xbf16>,
    %c0_7 = arith.constant 0 : index
    %c1 = arith.constant 1 : index
    %c0_8 = arith.constant 0 : index
    %c0_9 = arith.constant 0 : index
    %5 = vector.load %arg1[%c0_7, %c1, %c0_8, %c0_9] : memref<1x8x16x16xbf16, #tpu.memory_space<vmem>>, vector<1x1x16x16xbf16>
    %6 = vector.shape_cast %5 : vector<1x1x16x16xbf16> to vector<16x16xbf16>
    %c16 = arith.constant 16 : index
    %c16_10 = arith.constant 16 : index
    %7 = vector.load %arg10[%c16, %c16_10] : memref<128x128xbf16, #tpu.memory_space<vmem>>, vector<16x16xbf16>
    tpu.vector_store %arg10[%c16, %c16_10], %6 {strides = array<i32>} : memref<128x128xbf16, #tpu.memory_space<vmem>>, vector<16x16xbf16>,
    %c0_11 = arith.constant 0 : index
    %c2 = arith.constant 2 : index
    %c0_12 = arith.constant 0 : index
    %c0_13 = arith.constant 0 : index
    %8 = vector.load %arg1[%c0_11, %c2, %c0_12, %c0_13] : memref<1x8x16x16xbf16, #tpu.memory_space<vmem>>, vector<1x1x16x16xbf16>
    %9 = vector.shape_cast %8 : vector<1x1x16x16xbf16> to vector<16x16xbf16>
    %c32 = arith.constant 32 : index
    %c32_14 = arith.constant 32 : index
    %10 = vector.load %arg10[%c32, %c32_14] : memref<128x128xbf16, #tpu.memory_space<vmem>>, vector<16x16xbf16>
    tpu.vector_store %arg10[%c32, %c32_14], %9 {strides = array<i32>} : memref<128x128xbf16, #tpu.memory_space<vmem>>, vector<16x16xbf16>,
    %c0_15 = arith.constant 0 : index
    %c3 = arith.constant 3 : index
    %c0_16 = arith.constant 0 : index
    %c0_17 = arith.constant 0 : index
    %11 = vector.load %arg1[%c0_15, %c3, %c0_16, %c0_17] : memref<1x8x16x16xbf16, #tpu.memory_space<vmem>>, vector<1x1x16x16xbf16>
    %12 = vector.shape_cast %11 : vector<1x1x16x16xbf16> to vector<16x16xbf16>
    %c48 = arith.constant 48 : index
    %c48_18 = arith.constant 48 : index
    %13 = vector.load %arg10[%c48, %c48_18] : memref<128x128xbf16, #tpu.memory_space<vmem>>, vector<16x16xbf16>
    tpu.vector_store %arg10[%c48, %c48_18], %12 {strides = array<i32>} : memref<128x128xbf16, #tpu.memory_space<vmem>>, vector<16x16xbf16>,
    %c0_19 = arith.constant 0 : index
    %c4 = arith.constant 4 : index
    %c0_20 = arith.constant 0 : index
    %c0_21 = arith.constant 0 : index
    %14 = vector.load %arg1[%c0_19, %c4, %c0_20, %c0_21] : memref<1x8x16x16xbf16, #tpu.memory_space<vmem>>, vector<1x1x16x16xbf16>
    %15 = vector.shape_cast %14 : vector<1x1x16x16xbf16> to vector<16x16xbf16>
    %c64 = arith.constant 64 : index
    %c64_22 = arith.constant 64 : index
    %16 = vector.load %arg10[%c64, %c64_22] : memref<128x128xbf16, #tpu.memory_space<vmem>>, vector<16x16xbf16>
    tpu.vector_store %arg10[%c64, %c64_22], %15 {strides = array<i32>} : memref<128x128xbf16, #tpu.memory_space<vmem>>, vector<16x16xbf16>,
    %c0_23 = arith.constant 0 : index
    %c5 = arith.constant 5 : index
    %c0_24 = arith.constant 0 : index
    %c0_25 = arith.constant 0 : index
    %17 = vector.load %arg1[%c0_23, %c5, %c0_24, %c0_25] : memref<1x8x16x16xbf16, #tpu.memory_space<vmem>>, vector<1x1x16x16xbf16>
    %18 = vector.shape_cast %17 : vector<1x1x16x16xbf16> to vector<16x16xbf16>
    %c80 = arith.constant 80 : index
    %c80_26 = arith.constant 80 : index
    %19 = vector.load %arg10[%c80, %c80_26] : memref<128x128xbf16, #tpu.memory_space<vmem>>, vector<16x16xbf16>
    tpu.vector_store %arg10[%c80, %c80_26], %18 {strides = array<i32>} : memref<128x128xbf16, #tpu.memory_space<vmem>>, vector<16x16xbf16>,
    %c0_27 = arith.constant 0 : index
    %c6 = arith.constant 6 : index
    %c0_28 = arith.constant 0 : index
    %c0_29 = arith.constant 0 : index
    %20 = vector.load %arg1[%c0_27, %c6, %c0_28, %c0_29] : memref<1x8x16x16xbf16, #tpu.memory_space<vmem>>, vector<1x1x16x16xbf16>
    %21 = vector.shape_cast %20 : vector<1x1x16x16xbf16> to vector<16x16xbf16>
    %c96 = arith.constant 96 : index
    %c96_30 = arith.constant 96 : index
    %22 = vector.load %arg10[%c96, %c96_30] : memref<128x128xbf16, #tpu.memory_space<vmem>>, vector<16x16xbf16>
    tpu.vector_store %arg10[%c96, %c96_30], %21 {strides = array<i32>} : memref<128x128xbf16, #tpu.memory_space<vmem>>, vector<16x16xbf16>,
    %c0_31 = arith.constant 0 : index
    %c7 = arith.constant 7 : index
    %c0_32 = arith.constant 0 : index
    %c0_33 = arith.constant 0 : index
    %23 = vector.load %arg1[%c0_31, %c7, %c0_32, %c0_33] : memref<1x8x16x16xbf16, #tpu.memory_space<vmem>>, vector<1x1x16x16xbf16>
    %24 = vector.shape_cast %23 : vector<1x1x16x16xbf16> to vector<16x16xbf16>
    %c112 = arith.constant 112 : index
    %c112_34 = arith.constant 112 : index
    %25 = vector.load %arg10[%c112, %c112_34] : memref<128x128xbf16, #tpu.memory_space<vmem>>, vector<16x16xbf16>
    tpu.vector_store %arg10[%c112, %c112_34], %24 {strides = array<i32>} : memref<128x128xbf16, #tpu.memory_space<vmem>>, vector<16x16xbf16>,
    %c0_35 = arith.constant 0 : index
    %c0_36 = arith.constant 0 : index
    %26 = vector.load %arg10[%c0_35, %c0_36] : memref<128x128xbf16, #tpu.memory_space<vmem>>, vector<128x128xbf16>
    %c0_37 = arith.constant 0 : index
    %c0_38 = arith.constant 0 : index
    %c0_39 = arith.constant 0 : index
    %27 = vector.load %arg2[%c0_37, %c0_38, %c0_39] : memref<1x128x128xbf16, #tpu.memory_space<vmem>>, vector<1x128x128xbf16>
    %28 = vector.shape_cast %27 : vector<1x128x128xbf16> to vector<128x128xbf16>
    %cst_40 = arith.constant dense<0.000000e+00> : vector<128x128xf32>
    %29 = tpu.matmul %26, %28, %cst_40 {dimension_numbers = #tpu.dot_dimension_numbers<[1], [0], [0], [1], [0, 0, 1, 1], [], []>} : vector<128x128xbf16>, vector<128x128xbf16>, vector<128x128xf32> -> vector<128x128xf32>
    %c0_41 = arith.constant 0 : index
    %c0_42 = arith.constant 0 : index
    %c0_43 = arith.constant 0 : index
    %30 = vector.load %arg3[%c0_41, %c0_42, %c0_43] : memref<1x128x1xf32, #tpu.memory_space<vmem>>, vector<1x128x1xf32>
    %31 = vector.shape_cast %30 : vector<1x128x1xf32> to vector<128x1xf32>
    %32 = vector.broadcast %31 : vector<128x1xf32> to vector<128x128xf32>
    %33 = arith.mulf %32, %29 : vector<128x128xf32>
    %34 = arith.truncf %33 : vector<128x128xf32> to vector<128x128xbf16>
    %c0_44 = arith.constant 0 : index
    %c0_45 = arith.constant 0 : index
    %35 = vector.load %arg5[%c0_44, %c0_45] : memref<128x256xbf16, #tpu.memory_space<vmem>>, vector<128x256xbf16>
    %cst_46 = arith.constant dense<0.000000e+00> : vector<128x256xf32>
    %36 = tpu.matmul %34, %35, %cst_46 {dimension_numbers = #tpu.dot_dimension_numbers<[1], [0], [0], [1], [0, 0, 1, 1], [], []>} : vector<128x128xbf16>, vector<128x256xbf16>, vector<128x256xf32> -> vector<128x256xf32>
    %c0_47 = arith.constant 0 : index
    %c0_48 = arith.constant 0 : index
    %37 = vector.load %arg6[%c0_47, %c0_48] : memref<1x256xf32, #tpu.memory_space<vmem>>, vector<1x256xf32>
    %38 = vector.broadcast %37 : vector<1x256xf32> to vector<128x256xf32>
    %39 = arith.addf %36, %38 : vector<128x256xf32>
    %cst_49 = arith.constant 0.000000e+00 : f32
    %40 = vector.broadcast %cst_49 : f32 to vector<128x256xf32>
    %41 = arith.maximumf %39, %40 : vector<128x256xf32>
    %42 = arith.truncf %41 : vector<128x256xf32> to vector<128x256xbf16>
    %c0_50 = arith.constant 0 : index
    %c0_51 = arith.constant 0 : index
    %43 = vector.load %arg7[%c0_50, %c0_51] : memref<256x128xbf16, #tpu.memory_space<vmem>>, vector<256x128xbf16>
    %cst_52 = arith.constant dense<0.000000e+00> : vector<128x128xf32>
    %44 = tpu.matmul %42, %43, %cst_52 {dimension_numbers = #tpu.dot_dimension_numbers<[1], [0], [0], [1], [0, 0, 1, 1], [], []>} : vector<128x256xbf16>, vector<256x128xbf16>, vector<128x128xf32> -> vector<128x128xf32>
    %c0_53 = arith.constant 0 : index
    %c0_54 = arith.constant 0 : index
    %c0_55 = arith.constant 0 : index
    %45 = vector.load %arg4[%c0_53, %c0_54, %c0_55] : memref<1x128x1xf32, #tpu.memory_space<vmem>>, vector<1x128x1xf32>
    %46 = vector.shape_cast %45 : vector<1x128x1xf32> to vector<128x1xf32>
    %47 = vector.broadcast %46 : vector<128x1xf32> to vector<128x128xf32>
    %48 = arith.mulf %47, %44 : vector<128x128xf32>
    %49 = vector.shape_cast %48 : vector<128x128xf32> to vector<8x16x128xf32>
    %cst_56 = arith.constant dense<0.000000e+00> : vector<8x128xf32>
    %50 = vector.multi_reduction <add>, %49, %cst_56 [1] : vector<8x16x128xf32> to vector<8x128xf32>
    %c0_57 = arith.constant 0 : index
    %c0_58 = arith.constant 0 : index
    %51 = vector.load %arg8[%c0_57, %c0_58] : memref<1x128xf32, #tpu.memory_space<vmem>>, vector<1x128xf32>
    %52 = vector.broadcast %51 : vector<1x128xf32> to vector<8x128xf32>
    %53 = arith.addf %50, %52 : vector<8x128xf32>
    %c0_59 = arith.constant 0 : index
    %c0_60 = arith.constant 0 : index
    %54 = vector.load %arg9[%c0_59, %c0_60] : memref<8x128xf32, #tpu.memory_space<vmem>>, vector<8x128xf32>
    tpu.vector_store %arg9[%c0_59, %c0_60], %53 {strides = array<i32>} : memref<8x128xf32, #tpu.memory_space<vmem>>, vector<8x128xf32>,
    return
  }
  func.func @transform_0(%arg0: i32) -> (i32, i32, i32, i32) {
    %c0_i32 = arith.constant 0 : i32
    %c0_i32_0 = arith.constant 0 : i32
    %c0_i32_1 = arith.constant 0 : i32
    %c0_i32_2 = arith.constant 0 : i32
    return %arg0, %c0_i32, %c0_i32_0, %c0_i32_1 : i32, i32, i32, i32
  }
  func.func @transform_1(%arg0: i32) -> (i32, i32, i32) {
    %c0_i32 = arith.constant 0 : i32
    %c0_i32_0 = arith.constant 0 : i32
    %c0_i32_1 = arith.constant 0 : i32
    return %arg0, %c0_i32, %c0_i32_0 : i32, i32, i32
  }
  func.func @transform_2(%arg0: i32) -> (i32, i32, i32) {
    %c0_i32 = arith.constant 0 : i32
    %c0_i32_0 = arith.constant 0 : i32
    %c0_i32_1 = arith.constant 0 : i32
    return %arg0, %c0_i32, %c0_i32_0 : i32, i32, i32
  }
  func.func @transform_3(%arg0: i32) -> (i32, i32, i32) {
    %c0_i32 = arith.constant 0 : i32
    %c0_i32_0 = arith.constant 0 : i32
    %c0_i32_1 = arith.constant 0 : i32
    return %arg0, %c0_i32, %c0_i32_0 : i32, i32, i32
  }
  func.func @transform_4(%arg0: i32) -> (i32, i32) {
    %c0_i32 = arith.constant 0 : i32
    %c0_i32_0 = arith.constant 0 : i32
    %c0_i32_1 = arith.constant 0 : i32
    return %c0_i32, %c0_i32_0 : i32, i32
  }
  func.func @transform_5(%arg0: i32) -> (i32, i32) {
    %c0_i32 = arith.constant 0 : i32
    %c0_i32_0 = arith.constant 0 : i32
    %c0_i32_1 = arith.constant 0 : i32
    return %c0_i32, %c0_i32_0 : i32, i32
  }
  func.func @transform_6(%arg0: i32) -> (i32, i32) {
    %c0_i32 = arith.constant 0 : i32
    %c0_i32_0 = arith.constant 0 : i32
    %c0_i32_1 = arith.constant 0 : i32
    return %c0_i32, %c0_i32_0 : i32, i32
  }
  func.func @transform_7(%arg0: i32) -> (i32, i32) {
    %c0_i32 = arith.constant 0 : i32
    %c0_i32_0 = arith.constant 0 : i32
    %c0_i32_1 = arith.constant 0 : i32
    return %c0_i32, %c0_i32_0 : i32, i32
  }
  func.func @transform_8(%arg0: i32) -> (i32, i32) {
    %c0_i32 = arith.constant 0 : i32
    %c0_i32_0 = arith.constant 0 : i32
    return %arg0, %c0_i32 : i32, i32
  }
}

</mosaic_0001>

<llo_original>
// kernel: gcn_forward.1
$region0: #{gcn_forward.1}
  #allocation0 [shape = 'u32[]', space=smem, size = 0x4, offset = 0x4, fixed_abs, tag = 'smem constant byte address 0x4 - core index']
  #allocation1 [shape = 'u32[144,128]{1,0:T(1,128)}', space=vmem, size = 0x12000, scoped, tag = 'internal scratch']
  #allocation2 [shape = 'bf16[128,128]{1,0:T(16,128)(2,1)}', space=vmem, size = 0x8000, scoped, tag = 'scratch operand']
  %s0 = inlined_call_operand.vmem [shape: bf16[2,8,16,16], index: 0, kind: input, shape index: {}]
  %s1 = inlined_call_operand.vmem [shape: bf16[2,128,128], index: 1, kind: input, shape index: {}]
  %s2 = inlined_call_operand.vmem [shape: f32[2,128,1], index: 2, kind: input, shape index: {}]
  %s3 = inlined_call_operand.vmem [shape: f32[2,128,1], index: 3, kind: input, shape index: {}]
  %s4 = inlined_call_operand.vmem [shape: bf16[128,256], index: 4, kind: input, shape index: {}]
  %s5 = inlined_call_operand.vmem [shape: f32[1,256], index: 5, kind: input, shape index: {}]
  %s6 = inlined_call_operand.vmem [shape: bf16[256,128], index: 6, kind: input, shape index: {}]
  %s7 = inlined_call_operand.vmem [shape: f32[1,128], index: 7, kind: input, shape index: {}]
  %s8 = inlined_call_operand.hbm [shape: f32[16,128], index: 8, kind: output, shape index: {}]
  %s9 = sld [smem:[#allocation0]]
  $region65: #{gcn_forward.1} parent=0
    _
  %s11 = ssub.s32 1, %s9
  %s12 = scalar_select 0, %s11, %s9
  $region1: #{gcn_forward.1} parent=0
    #allocation3 [shape = 'u8[8192]{0}', space=vmem, size = 0x2000, scoped, tag = 'output window, operand 0']
    #allocation4 [shape = 's32[2]{0}', space=sflag, size = 0x8, scoped, tag = 'scoped memory for gcn_forward.1']
    %13 = vsyncpa [#allocation4], 0
    %s14 = scalar_lea.sflag [#allocation4], 1
    %15 = vsyncpa %s14, 0
    loop: start=0, step=1, limit=4
    $region2: #{gcn_forward.1} parent=1 // loop_pre_header
      _
    $region3: #{gcn_forward.1} parent=1 // loop_header
      %s17 = sphi 0, %s21
      %p18 = scmp.ge.s32.totalorder %s17, 4
      %s27 = sphi 0, %s29
      %s30 = sphi 0, %s27
      %s31 = sphi 0, %s30
      %s47 = sphi 0, %s31
      %s53 = sphi 0, %s55
      %s56 = sphi 0, %s53
      %s57 = sphi 0, %s56
      %s73 = sphi 0, %s57
      %s79 = sphi 0, %s81
      %s82 = sphi 0, %s79
      %s83 = sphi 0, %s82
      %s99 = sphi 0, %s83
      %s105 = sphi 0, %s107
      %s108 = sphi 0, %s105
      %s109 = sphi 0, %s108
      %s125 = sphi 0, %s109
      %s129 = sphi 0, %s129
      %s131 = sphi 0, %s129
      %s132 = sphi 0, %s131
      %s146 = sphi 0, %s132
      %s150 = sphi 0, %s150
      %s152 = sphi 0, %s150
      %s153 = sphi 0, %s152
      %s167 = sphi 0, %s153
      %s171 = sphi 0, %s171
      %s173 = sphi 0, %s171
      %s174 = sphi 0, %s173
      %s188 = sphi 0, %s174
      %s192 = sphi 0, %s192
      %s194 = sphi 0, %s192
      %s195 = sphi 0, %s194
      %s209 = sphi 0, %s195
      %s215 = sphi 0, %s217
      %s218 = sphi 0, %s215
      %s219 = sphi 0, %s218
      %s235 = sphi 0, %s219
    $region4: #{gcn_forward.1} parent=1 // loop_header_branch
      %20 = sbr.rel (%p18) target = $region8
    $region5: #{gcn_forward.1} parent=1 // loop_body
      %s22 = ssub.s32 %s17, 1
      %s23 = ssub.s32 %s17, 2
      %s24 = sadd.s32 %s17, 1
      %s25 = ssub.s32 %s17, %s24
      %p26 = scmp.eq.s32.totalorder %s25, 0
      %s28 = sadd.s32 %s27, 1
      %s29 = scalar_select %p26, %s27, %s28
      %p32 = pneg %p26
      %p33 = scmp.eq.s32.totalorder %s17, 1
      %p34 = por %p32, %p33
      %p35 = scmp.ne.s32.totalorder %s27, %s30
      %p36 = scmp.eq.s32.totalorder %s17, 0
      %p37 = por %p35, %p36
      %p38 = scmp.ne.s32.totalorder %s27, %s30
      %p39 = scmp.eq.s32.totalorder %s22, 1
      %p40 = por %p38, %p39
      %p41 = scmp.ne.s32.totalorder %s30, %s31
      %p42 = scmp.eq.s32.totalorder %s22, 0
      %p43 = por %p41, %p42
      %p44 = scmp.ne.s32.totalorder %s30, %s31
      %p45 = scmp.eq.s32.totalorder %s23, 1
      %p46 = por %p44, %p45
      %p48 = scmp.ne.s32.totalorder %s31, %s47
      %p49 = scmp.eq.s32.totalorder %s23, 0
      %p50 = por %p48, %p49
      %s51 = ssub.s32 %s17, %s24
      %p52 = scmp.eq.s32.totalorder %s51, 0
      %s54 = sadd.s32 %s53, 1
      %s55 = scalar_select %p52, %s53, %s54
      %p58 = pneg %p52
      %p59 = scmp.eq.s32.totalorder %s17, 1
      %p60 = por %p58, %p59
      %p61 = scmp.ne.s32.totalorder %s53, %s56
      %p62 = scmp.eq.s32.totalorder %s17, 0
      %p63 = por %p61, %p62
      %p64 = scmp.ne.s32.totalorder %s53, %s56
      %p65 = scmp.eq.s32.totalorder %s22, 1
      %p66 = por %p64, %p65
      %p67 = scmp.ne.s32.totalorder %s56, %s57
      %p68 = scmp.eq.s32.totalorder %s22, 0
      %p69 = por %p67, %p68
      %p70 = scmp.ne.s32.totalorder %s56, %s57
      %p71 = scmp.eq.s32.totalorder %s23, 1
      %p72 = por %p70, %p71
      %p74 = scmp.ne.s32.totalorder %s57, %s73
      %p75 = scmp.eq.s32.totalorder %s23, 0
      %p76 = por %p74, %p75
      %s77 = ssub.s32 %s17, %s24
      %p78 = scmp.eq.s32.totalorder %s77, 0
      %s80 = sadd.s32 %s79, 1
      %s81 = scalar_select %p78, %s79, %s80
      %p84 = pneg %p78
      %p85 = scmp.eq.s32.totalorder %s17, 1
      %p86 = por %p84, %p85
      %p87 = scmp.ne.s32.totalorder %s79, %s82
      %p88 = scmp.eq.s32.totalorder %s17, 0
      %p89 = por %p87, %p88
      %p90 = scmp.ne.s32.totalorder %s79, %s82
      %p91 = scmp.eq.s32.totalorder %s22, 1
      %p92 = por %p90, %p91
      %p93 = scmp.ne.s32.totalorder %s82, %s83
      %p94 = scmp.eq.s32.totalorder %s22, 0
      %p95 = por %p93, %p94
      %p96 = scmp.ne.s32.totalorder %s82, %s83
      %p97 = scmp.eq.s32.totalorder %s23, 1
      %p98 = por %p96, %p97
      %p100 = scmp.ne.s32.totalorder %s83, %s99
      %p101 = scmp.eq.s32.totalorder %s23, 0
      %p102 = por %p100, %p101
      %s103 = ssub.s32 %s17, %s24
      %p104 = scmp.eq.s32.totalorder %s103, 0
      %s106 = sadd.s32 %s105, 1
      %s107 = scalar_select %p104, %s105, %s106
      %p110 = pneg %p104
      %p111 = scmp.eq.s32.totalorder %s17, 1
      %p112 = por %p110, %p111
      %p113 = scmp.ne.s32.totalorder %s105, %s108
      %p114 = scmp.eq.s32.totalorder %s17, 0
      %p115 = por %p113, %p114
      %p116 = scmp.ne.s32.totalorder %s105, %s108
      %p117 = scmp.eq.s32.totalorder %s22, 1
      %p118 = por %p116, %p117
      %p119 = scmp.ne.s32.totalorder %s108, %s109
      %p120 = scmp.eq.s32.totalorder %s22, 0
      %p121 = por %p119, %p120
      %p122 = scmp.ne.s32.totalorder %s108, %s109
      %p123 = scmp.eq.s32.totalorder %s23, 1
      %p124 = por %p122, %p123
      %p126 = scmp.ne.s32.totalorder %s109, %s125
      %p127 = scmp.eq.s32.totalorder %s23, 0
      %p128 = por %p126, %p127
      %s130 = sadd.s32 %s129, 1
      %p133 = scmp.eq.s32.totalorder %s17, 1
      %p134 = scmp.ne.s32.totalorder %s129, %s131
      %p135 = scmp.eq.s32.totalorder %s17, 0
      %p136 = por %p134, %p135
      %p137 = scmp.ne.s32.totalorder %s129, %s131
      %p138 = scmp.eq.s32.totalorder %s22, 1
      %p139 = por %p137, %p138
      %p140 = scmp.ne.s32.totalorder %s131, %s132
      %p141 = scmp.eq.s32.totalorder %s22, 0
      %p142 = por %p140, %p141
      %p143 = scmp.ne.s32.totalorder %s131, %s132
      %p144 = scmp.eq.s32.totalorder %s23, 1
      %p145 = por %p143, %p144
      %p147 = scmp.ne.s32.totalorder %s132, %s146
      %p148 = scmp.eq.s32.totalorder %s23, 0
      %p149 = por %p147, %p148
      %s151 = sadd.s32 %s150, 1
      %p154 = scmp.eq.s32.totalorder %s17, 1
      %p155 = scmp.ne.s32.totalorder %s150, %s152
      %p156 = scmp.eq.s32.totalorder %s17, 0
      %p157 = por %p155, %p156
      %p158 = scmp.ne.s32.totalorder %s150, %s152
      %p159 = scmp.eq.s32.totalorder %s22, 1
      %p160 = por %p158, %p159
      %p161 = scmp.ne.s32.totalorder %s152, %s153
      %p162 = scmp.eq.s32.totalorder %s22, 0
      %p163 = por %p161, %p162
      %p164 = scmp.ne.s32.totalorder %s152, %s153
      %p165 = scmp.eq.s32.totalorder %s23, 1
      %p166 = por %p164, %p165
      %p168 = scmp.ne.s32.totalorder %s153, %s167
      %p169 = scmp.eq.s32.totalorder %s23, 0
      %p170 = por %p168, %p169
      %s172 = sadd.s32 %s171, 1
      %p175 = scmp.eq.s32.totalorder %s17, 1
      %p176 = scmp.ne.s32.totalorder %s171, %s173
      %p177 = scmp.eq.s32.totalorder %s17, 0
      %p178 = por %p176, %p177
      %p179 = scmp.ne.s32.totalorder %s171, %s173
      %p180 = scmp.eq.s32.totalorder %s22, 1
      %p181 = por %p179, %p180
      %p182 = scmp.ne.s32.totalorder %s173, %s174
      %p183 = scmp.eq.s32.totalorder %s22, 0
      %p184 = por %p182, %p183
      %p185 = scmp.ne.s32.totalorder %s173, %s174
      %p186 = scmp.eq.s32.totalorder %s23, 1
      %p187 = por %p185, %p186
      %p189 = scmp.ne.s32.totalorder %s174, %s188
      %p190 = scmp.eq.s32.totalorder %s23, 0
      %p191 = por %p189, %p190
      %s193 = sadd.s32 %s192, 1
      %p196 = scmp.eq.s32.totalorder %s17, 1
      %p197 = scmp.ne.s32.totalorder %s192, %s194
      %p198 = scmp.eq.s32.totalorder %s17, 0
      %p199 = por %p197, %p198
      %p200 = scmp.ne.s32.totalorder %s192, %s194
      %p201 = scmp.eq.s32.totalorder %s22, 1
      %p202 = por %p200, %p201
      %p203 = scmp.ne.s32.totalorder %s194, %s195
      %p204 = scmp.eq.s32.totalorder %s22, 0
      %p205 = por %p203, %p204
      %p206 = scmp.ne.s32.totalorder %s194, %s195
      %p207 = scmp.eq.s32.totalorder %s23, 1
      %p208 = por %p206, %p207
      %p210 = scmp.ne.s32.totalorder %s195, %s209
      %p211 = scmp.eq.s32.totalorder %s23, 0
      %p212 = por %p210, %p211
      %s213 = ssub.s32 %s17, %s24
      %p214 = scmp.eq.s32.totalorder %s213, 0
      %s216 = sadd.s32 %s215, 1
      %s217 = scalar_select %p214, %s215, %s216
      %p220 = pneg %p214
      %p221 = scmp.eq.s32.totalorder %s17, 1
      %p222 = por %p220, %p221
      %p223 = scmp.ne.s32.totalorder %s215, %s218
      %p224 = scmp.eq.s32.totalorder %s17, 0
      %p225 = por %p223, %p224
      %p226 = scmp.ne.s32.totalorder %s215, %s218
      %p227 = scmp.eq.s32.totalorder %s22, 1
      %p228 = por %p226, %p227
      %p229 = scmp.ne.s32.totalorder %s218, %s219
      %p230 = scmp.eq.s32.totalorder %s22, 0
      %p231 = por %p229, %p230
      %p232 = scmp.ne.s32.totalorder %s218, %s219
      %p233 = scmp.eq.s32.totalorder %s23, 1
      %p234 = por %p232, %p233
      %p236 = scmp.ne.s32.totalorder %s219, %s235
      %p237 = scmp.eq.s32.totalorder %s23, 0
      %p238 = por %p236, %p237
      %p239 = scmp.le.s32.totalorder 1, %s17
      %p240 = scmp.lt.s32.totalorder %s17, 3
      %p241 = pnand %p239, %p240
      %p242 = pneg %p241
      // Predicated region
      $region9: #{gcn_forward.1} parent=5 // pred_check
        _
      $region10: #{gcn_forward.1} parent=5 // pred_check_branch
        %244 = sbr.rel (%p241) target = $region12
      $region11: #{gcn_forward.1} parent=5 // pred_region
        %s245 = ssub.s32 %s17, 1
        // Predicated region
        $region13: #{gcn_forward.1} parent=11 // pred_check
          %p246 = pneg %p142
        $region14: #{gcn_forward.1} parent=11 // pred_check_branch
          %248 = sbr.rel (%p246) target = $region16
        $region15: #{gcn_forward.1} parent=11 // pred_region
          _
        $region16: #{gcn_forward.1} parent=11 // pred_fallthru
          _
        // Predicated region
        $region17: #{gcn_forward.1} parent=11 // pred_check
          %p249 = pneg %p163
        $region18: #{gcn_forward.1} parent=11 // pred_check_branch
          %251 = sbr.rel (%p249) target = $region20
        $region19: #{gcn_forward.1} parent=11 // pred_region
          _
        $region20: #{gcn_forward.1} parent=11 // pred_fallthru
          _
        // Predicated region
        $region21: #{gcn_forward.1} parent=11 // pred_check
          %p252 = pneg %p184
        $region22: #{gcn_forward.1} parent=11 // pred_check_branch
          %254 = sbr.rel (%p252) target = $region24
        $region23: #{gcn_forward.1} parent=11 // pred_region
          _
        $region24: #{gcn_forward.1} parent=11 // pred_fallthru
          _
        // Predicated region
        $region25: #{gcn_forward.1} parent=11 // pred_check
          %p255 = pneg %p205
        $region26: #{gcn_forward.1} parent=11 // pred_check_branch
          %257 = sbr.rel (%p255) target = $region28
        $region27: #{gcn_forward.1} parent=11 // pred_region
          _
        $region28: #{gcn_forward.1} parent=11 // pred_fallthru
          _
      $region12: #{gcn_forward.1} parent=5 // pred_fallthru
        _
      %p258 = scmp.lt.s32.totalorder %s17, 2
      // Predicated region
      $region29: #{gcn_forward.1} parent=5 // pred_check
        %p259 = pneg %p258
      $region30: #{gcn_forward.1} parent=5 // pred_check_branch
        %261 = sbr.rel (%p259) target = $region32
      $region31: #{gcn_forward.1} parent=5 // pred_region
        // Predicated region
        $region33: #{gcn_forward.1} parent=31 // pred_check
          %p262 = pneg %p37
        $region34: #{gcn_forward.1} parent=31 // pred_check_branch
          %264 = sbr.rel (%p262) target = $region36
        $region35: #{gcn_forward.1} parent=31 // pred_region
          %p265 = scmp.lt.s32.totalorder %s17, 1
          %s266 = scalar_select %p265, %s17, 1
          %s267 = smul.addr %s266, 16
          %s268 = smul.addr %s267, 4
          %s269 = scalar_lea.vmem %s0, %s268
        $region36: #{gcn_forward.1} parent=31 // pred_fallthru
          _
        // Predicated region
        $region37: #{gcn_forward.1} parent=31 // pred_check
          %p270 = pneg %p63
        $region38: #{gcn_forward.1} parent=31 // pred_check_branch
          %272 = sbr.rel (%p270) target = $region40
        $region39: #{gcn_forward.1} parent=31 // pred_region
          %p273 = scmp.lt.s32.totalorder %s17, 1
          %s274 = scalar_select %p273, %s17, 1
          %s275 = smul.addr %s274, 16
          %s276 = smul.addr %s275, 4
          %s277 = scalar_lea.vmem %s1, %s276
        $region40: #{gcn_forward.1} parent=31 // pred_fallthru
          _
        // Predicated region
        $region41: #{gcn_forward.1} parent=31 // pred_check
          %p278 = pneg %p89
        $region42: #{gcn_forward.1} parent=31 // pred_check_branch
          %280 = sbr.rel (%p278) target = $region44
        $region43: #{gcn_forward.1} parent=31 // pred_region
          %p281 = scmp.lt.s32.totalorder %s17, 1
          %s282 = scalar_select %p281, %s17, 1
          %s283 = smul.addr %s282, 16
          %s284 = smul.addr %s283, 8
          %s285 = scalar_lea.vmem %s2, %s284
        $region44: #{gcn_forward.1} parent=31 // pred_fallthru
          _
        // Predicated region
        $region45: #{gcn_forward.1} parent=31 // pred_check
          %p286 = pneg %p115
        $region46: #{gcn_forward.1} parent=31 // pred_check_branch
          %288 = sbr.rel (%p286) target = $region48
        $region47: #{gcn_forward.1} parent=31 // pred_region
          %p289 = scmp.lt.s32.totalorder %s17, 1
          %s290 = scalar_select %p289, %s17, 1
          %s291 = smul.addr %s290, 16
          %s292 = smul.addr %s291, 8
          %s293 = scalar_lea.vmem %s3, %s292
        $region48: #{gcn_forward.1} parent=31 // pred_fallthru
          _
      $region32: #{gcn_forward.1} parent=5 // pred_fallthru
        _
      %p294 = scmp.le.s32.totalorder 1, %s17
      %p295 = scmp.lt.s32.totalorder %s17, 3
      %p296 = pnand %p294, %p295
      %p297 = pneg %p296
      // Predicated region
      $region49: #{gcn_forward.1} parent=5 // pred_check
        _
      $region50: #{gcn_forward.1} parent=5 // pred_check_branch
        %299 = sbr.rel (%p296) target = $region52
      $region51: #{gcn_forward.1} parent=5 // pred_region
        %s300 = ssub.s32 %s17, 1
        %p301 = scmp.lt.s32.totalorder %s22, 1
        %s302 = scalar_select %p301, %s22, 1
        %s303 = smul.addr %s302, 16
        %s304 = smul.addr %s303, 4
        %s305 = scalar_lea.vmem %s0, %s304
        %p306 = pneg %p43
        %p307 = pneg %p40
        %p308 = scmp.lt.s32.totalorder %s22, 1
        %s309 = scalar_select %p308, %s22, 1
        %s310 = smul.addr %s309, 16
        %s311 = smul.addr %s310, 4
        %s312 = scalar_lea.vmem %s1, %s311
        %p313 = pneg %p69
        %p314 = pneg %p66
        %p315 = scmp.lt.s32.totalorder %s22, 1
        %s316 = scalar_select %p315, %s22, 1
        %s317 = smul.addr %s316, 16
        %s318 = smul.addr %s317, 8
        %s319 = scalar_lea.vmem %s2, %s318
        %p320 = pneg %p95
        %p321 = pneg %p92
        %p322 = scmp.lt.s32.totalorder %s22, 1
        %s323 = scalar_select %p322, %s22, 1
        %s324 = smul.addr %s323, 16
        %s325 = smul.addr %s324, 8
        %s326 = scalar_lea.vmem %s3, %s325
        %p327 = pneg %p121
        %p328 = pneg %p118
        %p329 = pneg %p142
        %p330 = pneg %p139
        %p331 = pneg %p163
        %p332 = pneg %p160
        %p333 = pneg %p184
        %p334 = pneg %p181
        %p335 = pneg %p205
        %p336 = pneg %p202
        %p337 = pneg %p231
        %p338 = pneg %p228
        %s339 = sand.u32 %s218, 1
        %s340 = scalar_lea.sflag [#allocation4], %s339
        %s341 = sand.u32 %s218, 1
        %s342 = smul.addr %s341, 8
        %s343 = scalar_lea.vmem [#allocation3], %s342
        %p344 = scmp.lt.s32.totalorder %s22, 1
        %s345 = scalar_select %p344, %s22, 1
        %s346 = smul.addr %s345, 16
        %s347 = smul.addr %s346, 4
        %s348 = scalar_lea.vmem %s0, %s347
        %p349 = scmp.lt.s32.totalorder %s22, 1
        %s350 = scalar_select %p349, %s22, 1
        %s351 = smul.addr %s350, 16
        %s352 = smul.addr %s351, 4
        %s353 = scalar_lea.vmem %s1, %s352
        %p354 = scmp.lt.s32.totalorder %s22, 1
        %s355 = scalar_select %p354, %s22, 1
        %s356 = smul.addr %s355, 16
        %s357 = smul.addr %s356, 8
        %s358 = scalar_lea.vmem %s2, %s357
        %p359 = scmp.lt.s32.totalorder %s22, 1
        %s360 = scalar_select %p359, %s22, 1
        %s361 = smul.addr %s360, 16
        %s362 = smul.addr %s361, 8
        %s363 = scalar_lea.vmem %s3, %s362
        %365 = vst [vmem:[#allocation2] sm:$0xff] 0
        %366 = vst [vmem:[#allocation2 + $0x8] sm:$0xff] 0
        %367 = vst [vmem:[#allocation2 + $0x10] sm:$0xff] 0
        %368 = vst [vmem:[#allocation2 + $0x18] sm:$0xff] 0
        %369 = vst [vmem:[#allocation2 + $0x20] sm:$0xff] 0
        %370 = vst [vmem:[#allocation2 + $0x28] sm:$0xff] 0
        %371 = vst [vmem:[#allocation2 + $0x30] sm:$0xff] 0
        %372 = vst [vmem:[#allocation2 + $0x38] sm:$0xff] 0
        %v373 = vld [vmem:[%s348] sm:$0xf]
        %v374 = vld [vmem:[%s348 + $0x4] sm:$0xf]
        %v377 = vunpack.c.l.b16 %v373
        %v378 = vunpack.c.l.b16 %v374
        %v379 = vpack.c.b16 %v378, %v377
        %vm381 = vcmask 130048
        %382 = vst.msk [vmem:[#allocation2] sm:$0xff] %vm381, %v379
        %s383 = scalar_lea.vmem %s348, 8
        %v384 = vld [vmem:[%s383] sm:$0xf]
        %v385 = vld [vmem:[%s383 + $0x4] sm:$0xf]
        %v388 = vunpack.c.l.b16 %v384
        %v389 = vunpack.c.l.b16 %v385
        %v390 = vpack.c.b16 %v389, %v388
        %391 = vrot.lane.b32.xlu0 %v390, 16
        %v392 = vpop.permute.xlu0 %391
        %vm394 = vcmask 261248
        %395 = vst.msk [vmem:[#allocation2 + $0x8] sm:$0xff] %vm394, %v392
        %s396 = scalar_lea.vmem %s348, 16
        %v397 = vld [vmem:[%s396] sm:$0xf]
        %v398 = vld [vmem:[%s396 + $0x4] sm:$0xf]
        %v401 = vunpack.c.l.b16 %v397
        %v402 = vunpack.c.l.b16 %v398
        %v403 = vpack.c.b16 %v402, %v401
        %404 = vrot.lane.b32.xlu0 %v403, 32
        %v405 = vpop.permute.xlu0 %404
        %vm407 = vcmask 392448
        %408 = vst.msk [vmem:[#allocation2 + $0x10] sm:$0xff] %vm407, %v405
        %s409 = scalar_lea.vmem %s348, 24
        %v410 = vld [vmem:[%s409] sm:$0xf]
        %v411 = vld [vmem:[%s409 + $0x4] sm:$0xf]
        %v414 = vunpack.c.l.b16 %v410
        %v415 = vunpack.c.l.b16 %v411
        %v416 = vpack.c.b16 %v415, %v414
        %417 = vrot.lane.b32.xlu0 %v416, 48
        %v418 = vpop.permute.xlu0 %417
        %vm420 = vcmask 523648
        %421 = vst.msk [vmem:[#allocation2 + $0x18] sm:$0xff] %vm420, %v418
        %s422 = scalar_lea.vmem %s348, 32
        %v423 = vld [vmem:[%s422] sm:$0xf]
        %v424 = vld [vmem:[%s422 + $0x4] sm:$0xf]
        %v427 = vunpack.c.l.b16 %v423
        %v428 = vunpack.c.l.b16 %v424
        %v429 = vpack.c.b16 %v428, %v427
        %430 = vrot.lane.b32.xlu0 %v429, 64
        %v431 = vpop.permute.xlu0 %430
        %vm433 = vcmask 654848
        %434 = vst.msk [vmem:[#allocation2 + $0x20] sm:$0xff] %vm433, %v431
        %s435 = scalar_lea.vmem %s348, 40
        %v436 = vld [vmem:[%s435] sm:$0xf]
        %v437 = vld [vmem:[%s435 + $0x4] sm:$0xf]
        %v440 = vunpack.c.l.b16 %v436
        %v441 = vunpack.c.l.b16 %v437
        %v442 = vpack.c.b16 %v441, %v440
        %443 = vrot.lane.b32.xlu0 %v442, 80
        %v444 = vpop.permute.xlu0 %443
        %vm446 = vcmask 786048
        %447 = vst.msk [vmem:[#allocation2 + $0x28] sm:$0xff] %vm446, %v444
        %s448 = scalar_lea.vmem %s348, 48
        %v449 = vld [vmem:[%s448] sm:$0xf]
        %v450 = vld [vmem:[%s448 + $0x4] sm:$0xf]
        %v453 = vunpack.c.l.b16 %v449
        %v454 = vunpack.c.l.b16 %v450
        %v455 = vpack.c.b16 %v454, %v453
        %456 = vrot.lane.b32.xlu0 %v455, 96
        %v457 = vpop.permute.xlu0 %456
        %vm459 = vcmask 917248
        %460 = vst.msk [vmem:[#allocation2 + $0x30] sm:$0xff] %vm459, %v457
        %s461 = scalar_lea.vmem %s348, 56
        %v462 = vld [vmem:[%s461] sm:$0xf]
        %v463 = vld [vmem:[%s461 + $0x4] sm:$0xf]
        %v466 = vunpack.c.l.b16 %v462
        %v467 = vunpack.c.l.b16 %v463
        %v468 = vpack.c.b16 %v467, %v466
        %469 = vrot.lane.b32.xlu0 %v468, 112
        %v470 = vpop.permute.xlu0 %469
        %vm472 = vcmask 1048448
        %473 = vst.msk [vmem:[#allocation2 + $0x38] sm:$0xff] %vm472, %v470
        %v474 = vld [vmem:[#allocation2] sm:$0xff]
        %v475 = vld [vmem:[#allocation2 + $0x8] sm:$0xff]
        %v476 = vld [vmem:[#allocation2 + $0x10] sm:$0xff]
        %v477 = vld [vmem:[#allocation2 + $0x18] sm:$0xff]
        %v478 = vld [vmem:[#allocation2 + $0x20] sm:$0xff]
        %v479 = vld [vmem:[#allocation2 + $0x28] sm:$0xff]
        %v480 = vld [vmem:[#allocation2 + $0x30] sm:$0xff]
        %v481 = vld [vmem:[#allocation2 + $0x38] sm:$0xff]
        %v482 = vld [vmem:[%s353] sm:$0xf]
        %v483 = vld [vmem:[%s353 + $0x4] sm:$0xf]
        %v484 = vld [vmem:[%s353 + $0x8] sm:$0xf]
        %v485 = vld [vmem:[%s353 + $0xc] sm:$0xf]
        %v486 = vld [vmem:[%s353 + $0x10] sm:$0xf]
        %v487 = vld [vmem:[%s353 + $0x14] sm:$0xf]
        %v488 = vld [vmem:[%s353 + $0x18] sm:$0xf]
        %v489 = vld [vmem:[%s353 + $0x1c] sm:$0xf]
        %v490 = vld [vmem:[%s353 + $0x20] sm:$0xf]
        %v491 = vld [vmem:[%s353 + $0x24] sm:$0xf]
        %v492 = vld [vmem:[%s353 + $0x28] sm:$0xf]
        %v493 = vld [vmem:[%s353 + $0x2c] sm:$0xf]
        %v494 = vld [vmem:[%s353 + $0x30] sm:$0xf]
        %v495 = vld [vmem:[%s353 + $0x34] sm:$0xf]
        %v496 = vld [vmem:[%s353 + $0x38] sm:$0xf]
        %v497 = vld [vmem:[%s353 + $0x3c] sm:$0xf]
        %v514 = vunpack.c.l.b16 %v482
        %v515 = vunpack.c.l.b16 %v483
        %v516 = vunpack.c.l.b16 %v484
        %v517 = vunpack.c.l.b16 %v485
        %v518 = vunpack.c.l.b16 %v486
        %v519 = vunpack.c.l.b16 %v487
        %v520 = vunpack.c.l.b16 %v488
        %v521 = vunpack.c.l.b16 %v489
        %v522 = vunpack.c.l.b16 %v490
        %v523 = vunpack.c.l.b16 %v491
        %v524 = vunpack.c.l.b16 %v492
        %v525 = vunpack.c.l.b16 %v493
        %v526 = vunpack.c.l.b16 %v494
        %v527 = vunpack.c.l.b16 %v495
        %v528 = vunpack.c.l.b16 %v496
        %v529 = vunpack.c.l.b16 %v497
        %v530 = vpack.c.b16 %v515, %v514
        %v531 = vpack.c.b16 %v517, %v516
        %v532 = vpack.c.b16 %v519, %v518
        %v533 = vpack.c.b16 %v521, %v520
        %v534 = vpack.c.b16 %v523, %v522
        %v535 = vpack.c.b16 %v525, %v524
        %v536 = vpack.c.b16 %v527, %v526
        %v537 = vpack.c.b16 %v529, %v528
        %546 = vmatprep.subr.bf16.mxu0 0
        %547 = vmatpush1.bf16.msra.mxu0 %v530
        %548 = vmatprep.subr.bf16.mxu0 0
        %549 = vmatpush1.bf16.msra.mxu0 %v531
        %550 = vmatprep.subr.bf16.mxu0 0
        %551 = vmatpush1.bf16.msra.mxu0 %v532
        %552 = vmatprep.subr.bf16.mxu0 0
        %553 = vmatpush1.bf16.msra.mxu0 %v533
        %554 = vmatprep.subr.bf16.mxu0 0
        %555 = vmatpush1.bf16.msra.mxu0 %v534
        %556 = vmatprep.subr.bf16.mxu0 0
        %557 = vmatpush1.bf16.msra.mxu0 %v535
        %558 = vmatprep.subr.bf16.mxu0 0
        %559 = vmatpush1.bf16.msra.mxu0 %v536
        %560 = vmatprep.subr.bf16.mxu0 0
        %561 = vmatpush1.bf16.msra.mxu0 %v537
        %562 = vmatprep.subr.bf16.mxu0 0
        %563 = vmatpush1.bf16.msra.mxu0 0
        %564 = vmatprep.subr.bf16.mxu0 0
        %565 = vmatpush1.bf16.msra.mxu0 0
        %566 = vmatprep.subr.bf16.mxu0 0
        %567 = vmatpush1.bf16.msra.mxu0 0
        %568 = vmatprep.subr.bf16.mxu0 0
        %569 = vmatpush1.bf16.msra.mxu0 0
        %570 = vmatprep.subr.bf16.mxu0 0
        %571 = vmatpush1.bf16.msra.mxu0 0
        %572 = vmatprep.subr.bf16.mxu0 0
        %573 = vmatpush1.bf16.msra.mxu0 0
        %574 = vmatprep.subr.bf16.mxu0 0
        %575 = vmatpush1.bf16.msra.mxu0 0
        %576 = vmatprep.subr.bf16.mxu0 0
        %577 = vmatpush1.bf16.msra.mxu0 0
        %578 = vmatprep.mubr.bf16.mxu0 0
        %579 = vmatmul.mubr.bf16.gmra.mrb[0].mxu0 %v474
        %v580 = vpop.f32.mrb[0].mxu0
        %v581 = vadd.f32 0.0, %v580
        %v582 = vpop.f32.mrb[0].mxu0
        %v583 = vpop.f32.mrb[0].mxu0
        %v584 = vadd.f32 0.0, %v583
        %v585 = vpop.f32.mrb[0].mxu0
        %586 = vmatprep.mubr.bf16.mxu0 0
        %587 = vmatmul.mubr.bf16.gmra.mrb[0].mxu0 %v475
        %v588 = vpop.f32.mrb[0].mxu0
        %v589 = vadd.f32 0.0, %v588
        %v590 = vpop.f32.mrb[0].mxu0
        %v591 = vpop.f32.mrb[0].mxu0
        %v592 = vadd.f32 0.0, %v591
        %v593 = vpop.f32.mrb[0].mxu0
        %594 = vmatprep.mubr.bf16.mxu0 0
        %595 = vmatmul.mubr.bf16.gmra.mrb[0].mxu0 %v476
        %v596 = vpop.f32.mrb[0].mxu0
        %v597 = vadd.f32 0.0, %v596
        %v598 = vpop.f32.mrb[0].mxu0
        %v599 = vpop.f32.mrb[0].mxu0
        %v600 = vadd.f32 0.0, %v599
        %v601 = vpop.f32.mrb[0].mxu0
        %602 = vmatprep.mubr.bf16.mxu0 0
        %603 = vmatmul.mubr.bf16.gmra.mrb[0].mxu0 %v477
        %v604 = vpop.f32.mrb[0].mxu0
        %v605 = vadd.f32 0.0, %v604
        %v606 = vpop.f32.mrb[0].mxu0
        %v607 = vpop.f32.mrb[0].mxu0
        %v608 = vadd.f32 0.0, %v607
        %v609 = vpop.f32.mrb[0].mxu0
        %610 = vmatprep.mubr.bf16.mxu0 0
        %611 = vmatmul.mubr.bf16.gmra.mrb[0].mxu0 %v478
        %v612 = vpop.f32.mrb[0].mxu0
        %v613 = vadd.f32 0.0, %v612
        %v614 = vpop.f32.mrb[0].mxu0
        %v615 = vpop.f32.mrb[0].mxu0
        %v616 = vadd.f32 0.0, %v615
        %v617 = vpop.f32.mrb[0].mxu0
        %618 = vmatprep.mubr.bf16.mxu0 0
        %619 = vmatmul.mubr.bf16.gmra.mrb[0].mxu0 %v479
        %v620 = vpop.f32.mrb[0].mxu0
        %v621 = vadd.f32 0.0, %v620
        %v622 = vpop.f32.mrb[0].mxu0
        %v623 = vpop.f32.mrb[0].mxu0
        %v624 = vadd.f32 0.0, %v623
        %v625 = vpop.f32.mrb[0].mxu0
        %626 = vmatprep.mubr.bf16.mxu0 0
        %627 = vmatmul.mubr.bf16.gmra.mrb[0].mxu0 %v480
        %v628 = vpop.f32.mrb[0].mxu0
        %v629 = vadd.f32 0.0, %v628
        %v630 = vpop.f32.mrb[0].mxu0
        %v631 = vpop.f32.mrb[0].mxu0
        %v632 = vadd.f32 0.0, %v631
        %v633 = vpop.f32.mrb[0].mxu0
        %634 = vmatprep.mubr.bf16.mxu0 0
        %635 = vmatmul.mubr.bf16.gmra.mrb[0].mxu0 %v481
        %v636 = vpop.f32.mrb[0].mxu0
        %v637 = vadd.f32 0.0, %v636
        %v638 = vpop.f32.mrb[0].mxu0
        %v639 = vpop.f32.mrb[0].mxu0
        %v640 = vadd.f32 0.0, %v639
        %v641 = vpop.f32.mrb[0].mxu0
        %642 = vdwg.mxu0
        %v643 = vld [vmem:[%s358] sm:$0xff]
        %v644 = vld [vmem:[%s358 + $0x8] sm:$0xff]
        %v645 = vld [vmem:[%s358 + $0x10] sm:$0xff]
        %v646 = vld [vmem:[%s358 + $0x18] sm:$0xff]
        %v647 = vld [vmem:[%s358 + $0x20] sm:$0xff]
        %v648 = vld [vmem:[%s358 + $0x28] sm:$0xff]
        %v649 = vld [vmem:[%s358 + $0x30] sm:$0xff]
        %v650 = vld [vmem:[%s358 + $0x38] sm:$0xff]
        %v651 = vld [vmem:[%s358 + $0x40] sm:$0xff]
        %v652 = vld [vmem:[%s358 + $0x48] sm:$0xff]
        %v653 = vld [vmem:[%s358 + $0x50] sm:$0xff]
        %v654 = vld [vmem:[%s358 + $0x58] sm:$0xff]
        %v655 = vld [vmem:[%s358 + $0x60] sm:$0xff]
        %v656 = vld [vmem:[%s358 + $0x68] sm:$0xff]
        %v657 = vld [vmem:[%s358 + $0x70] sm:$0xff]
        %v658 = vld [vmem:[%s358 + $0x78] sm:$0xff]
        %660 = vset.pattern.permute.xlu0 0
        %661 = vperm.xlu0 %660, %v643
        %v662 = vpop.permute.xlu0 %661
        %665 = vset.pattern.permute.xlu0 0
        %666 = vperm.xlu0 %665, %v644
        %v667 = vpop.permute.xlu0 %666
        %670 = vset.pattern.permute.xlu0 0
        %671 = vperm.xlu0 %670, %v645
        %v672 = vpop.permute.xlu0 %671
        %675 = vset.pattern.permute.xlu0 0
        %676 = vperm.xlu0 %675, %v646
        %v677 = vpop.permute.xlu0 %676
        %680 = vset.pattern.permute.xlu0 0
        %681 = vperm.xlu0 %680, %v647
        %v682 = vpop.permute.xlu0 %681
        %685 = vset.pattern.permute.xlu0 0
        %686 = vperm.xlu0 %685, %v648
        %v687 = vpop.permute.xlu0 %686
        %690 = vset.pattern.permute.xlu0 0
        %691 = vperm.xlu0 %690, %v649
        %v692 = vpop.permute.xlu0 %691
        %695 = vset.pattern.permute.xlu0 0
        %696 = vperm.xlu0 %695, %v650
        %v697 = vpop.permute.xlu0 %696
        %700 = vset.pattern.permute.xlu0 0
        %701 = vperm.xlu0 %700, %v651
        %v702 = vpop.permute.xlu0 %701
        %705 = vset.pattern.permute.xlu0 0
        %706 = vperm.xlu0 %705, %v652
        %v707 = vpop.permute.xlu0 %706
        %710 = vset.pattern.permute.xlu0 0
        %711 = vperm.xlu0 %710, %v653
        %v712 = vpop.permute.xlu0 %711
        %715 = vset.pattern.permute.xlu0 0
        %716 = vperm.xlu0 %715, %v654
        %v717 = vpop.permute.xlu0 %716
        %720 = vset.pattern.permute.xlu0 0
        %721 = vperm.xlu0 %720, %v655
        %v722 = vpop.permute.xlu0 %721
        %725 = vset.pattern.permute.xlu0 0
        %726 = vperm.xlu0 %725, %v656
        %v727 = vpop.permute.xlu0 %726
        %730 = vset.pattern.permute.xlu0 0
        %731 = vperm.xlu0 %730, %v657
        %v732 = vpop.permute.xlu0 %731
        %735 = vset.pattern.permute.xlu0 0
        %736 = vperm.xlu0 %735, %v658
        %v737 = vpop.permute.xlu0 %736
        %v739 = vmul.f32 %v662, %v581
        %v740 = vmul.f32 %v667, %v584
        %v741 = vmul.f32 %v672, %v589
        %v742 = vmul.f32 %v677, %v592
        %v743 = vmul.f32 %v682, %v597
        %v744 = vmul.f32 %v687, %v600
        %v745 = vmul.f32 %v692, %v605
        %v746 = vmul.f32 %v697, %v608
        %v747 = vmul.f32 %v702, %v613
        %v748 = vmul.f32 %v707, %v616
        %v749 = vmul.f32 %v712, %v621
        %v750 = vmul.f32 %v717, %v624
        %v751 = vmul.f32 %v722, %v629
        %v752 = vmul.f32 %v727, %v632
        %v753 = vmul.f32 %v732, %v637
        %v754 = vmul.f32 %v737, %v640
        %v755 = vpack.c.bf16 %v740, %v739
        %v756 = vpack.c.bf16 %v742, %v741
        %v757 = vpack.c.bf16 %v744, %v743
        %v758 = vpack.c.bf16 %v746, %v745
        %v759 = vpack.c.bf16 %v748, %v747
        %v760 = vpack.c.bf16 %v750, %v749
        %v761 = vpack.c.bf16 %v752, %v751
        %v762 = vpack.c.bf16 %v754, %v753
        %v763 = vld [vmem:[%s4] sm:$0xff]
        %v764 = vld [vmem:[%s4 + $0x8] sm:$0xff]
        %v765 = vld [vmem:[%s4 + $0x10] sm:$0xff]
        %v766 = vld [vmem:[%s4 + $0x18] sm:$0xff]
        %v767 = vld [vmem:[%s4 + $0x20] sm:$0xff]
        %v768 = vld [vmem:[%s4 + $0x28] sm:$0xff]
        %v769 = vld [vmem:[%s4 + $0x30] sm:$0xff]
        %v770 = vld [vmem:[%s4 + $0x38] sm:$0xff]
        %v771 = vld [vmem:[%s4 + $0x40] sm:$0xff]
        %v772 = vld [vmem:[%s4 + $0x48] sm:$0xff]
        %v773 = vld [vmem:[%s4 + $0x50] sm:$0xff]
        %v774 = vld [vmem:[%s4 + $0x58] sm:$0xff]
        %v775 = vld [vmem:[%s4 + $0x60] sm:$0xff]
        %v776 = vld [vmem:[%s4 + $0x68] sm:$0xff]
        %v777 = vld [vmem:[%s4 + $0x70] sm:$0xff]
        %v778 = vld [vmem:[%s4 + $0x78] sm:$0xff]
        %v779 = vld [vmem:[%s5] sm:$0x3]
        %v781 = vlaneseq
        %v782 = vshrl.u32 %v781, 7
        %v783 = vsub.s32 0, %v782
        %v784 = vrot.slane %v779, %v783
        %v785 = vlaneseq
        %v786 = vshrl.u32 %v785, 7
        %v787 = vsub.s32 1, %v786
        %v788 = vrot.slane %v779, %v787
        %v807 = vunpack.c.l.b16 %v763
        %v808 = vunpack.c.h.b16 %v763
        %v809 = vunpack.c.l.b16 %v764
        %v810 = vunpack.c.h.b16 %v764
        %v811 = vunpack.c.l.b16 %v765
        %v812 = vunpack.c.h.b16 %v765
        %v813 = vunpack.c.l.b16 %v766
        %v814 = vunpack.c.h.b16 %v766
        %v815 = vunpack.c.l.b16 %v767
        %v816 = vunpack.c.h.b16 %v767
        %v817 = vunpack.c.l.b16 %v768
        %v818 = vunpack.c.h.b16 %v768
        %v819 = vunpack.c.l.b16 %v769
        %v820 = vunpack.c.h.b16 %v769
        %v821 = vunpack.c.l.b16 %v770
        %v822 = vunpack.c.h.b16 %v770
        %v823 = vunpack.c.l.b16 %v771
        %v824 = vunpack.c.h.b16 %v771
        %v825 = vunpack.c.l.b16 %v772
        %v826 = vunpack.c.h.b16 %v772
        %v827 = vunpack.c.l.b16 %v773
        %v828 = vunpack.c.h.b16 %v773
        %v829 = vunpack.c.l.b16 %v774
        %v830 = vunpack.c.h.b16 %v774
        %v831 = vunpack.c.l.b16 %v775
        %v832 = vunpack.c.h.b16 %v775
        %v833 = vunpack.c.l.b16 %v776
        %v834 = vunpack.c.h.b16 %v776
        %v835 = vunpack.c.l.b16 %v777
        %v836 = vunpack.c.h.b16 %v777
        %v837 = vunpack.c.l.b16 %v778
        %v838 = vunpack.c.h.b16 %v778
        %v839 = vpack.c.b16 %v809, %v807
        %v840 = vpack.c.b16 %v810, %v808
        %v841 = vpack.c.b16 %v813, %v811
        %v842 = vpack.c.b16 %v814, %v812
        %v843 = vpack.c.b16 %v817, %v815
        %v844 = vpack.c.b16 %v818, %v816
        %v845 = vpack.c.b16 %v821, %v819
        %v846 = vpack.c.b16 %v822, %v820
        %v847 = vpack.c.b16 %v825, %v823
        %v848 = vpack.c.b16 %v826, %v824
        %v849 = vpack.c.b16 %v829, %v827
        %v850 = vpack.c.b16 %v830, %v828
        %v851 = vpack.c.b16 %v833, %v831
        %v852 = vpack.c.b16 %v834, %v832
        %v853 = vpack.c.b16 %v837, %v835
        %v854 = vpack.c.b16 %v838, %v836
        %871 = vmatprep.subr.bf16.mxu0 %v840
        %872 = vmatpush1.bf16.msra.mxu0 %v839
        %873 = vmatprep.subr.bf16.mxu0 %v842
        %874 = vmatpush1.bf16.msra.mxu0 %v841
        %875 = vmatprep.subr.bf16.mxu0 %v844
        %876 = vmatpush1.bf16.msra.mxu0 %v843
        %877 = vmatprep.subr.bf16.mxu0 %v846
        %878 = vmatpush1.bf16.msra.mxu0 %v845
        %879 = vmatprep.subr.bf16.mxu0 %v848
        %880 = vmatpush1.bf16.msra.mxu0 %v847
        %881 = vmatprep.subr.bf16.mxu0 %v850
        %882 = vmatpush1.bf16.msra.mxu0 %v849
        %883 = vmatprep.subr.bf16.mxu0 %v852
        %884 = vmatpush1.bf16.msra.mxu0 %v851
        %885 = vmatprep.subr.bf16.mxu0 %v854
        %886 = vmatpush1.bf16.msra.mxu0 %v853
        %887 = vmatprep.subr.bf16.mxu0 0
        %888 = vmatpush1.bf16.msra.mxu0 0
        %889 = vmatprep.subr.bf16.mxu0 0
        %890 = vmatpush1.bf16.msra.mxu0 0
        %891 = vmatprep.subr.bf16.mxu0 0
        %892 = vmatpush1.bf16.msra.mxu0 0
        %893 = vmatprep.subr.bf16.mxu0 0
        %894 = vmatpush1.bf16.msra.mxu0 0
        %895 = vmatprep.subr.bf16.mxu0 0
        %896 = vmatpush1.bf16.msra.mxu0 0
        %897 = vmatprep.subr.bf16.mxu0 0
        %898 = vmatpush1.bf16.msra.mxu0 0
        %899 = vmatprep.subr.bf16.mxu0 0
        %900 = vmatpush1.bf16.msra.mxu0 0
        %901 = vmatprep.subr.bf16.mxu0 0
        %902 = vmatpush1.bf16.msra.mxu0 0
        %903 = vmatprep.mubr.bf16.mxu0 0
        %904 = vmatmul.mubr.bf16.gmra.mrb[0].mxu0 %v755
        %v905 = vpop.f32.mrb[0].mxu0
        %v906 = vadd.f32 %v784, %v905
        %v907 = vpop.f32.mrb[0].mxu0
        %v908 = vadd.f32 %v788, %v907
        %v909 = vpop.f32.mrb[0].mxu0
        %v910 = vadd.f32 %v784, %v909
        %v911 = vpop.f32.mrb[0].mxu0
        %v912 = vadd.f32 %v788, %v911
        %913 = vmatprep.mubr.bf16.mxu0 0
        %914 = vmatmul.mubr.bf16.gmra.mrb[0].mxu0 %v756
        %v915 = vpop.f32.mrb[0].mxu0
        %v916 = vadd.f32 %v784, %v915
        %v917 = vpop.f32.mrb[0].mxu0
        %v918 = vadd.f32 %v788, %v917
        %v919 = vpop.f32.mrb[0].mxu0
        %v920 = vadd.f32 %v784, %v919
        %v921 = vpop.f32.mrb[0].mxu0
        %v922 = vadd.f32 %v788, %v921
        %923 = vmatprep.mubr.bf16.mxu0 0
        %924 = vmatmul.mubr.bf16.gmra.mrb[0].mxu0 %v757
        %v925 = vpop.f32.mrb[0].mxu0
        %v926 = vadd.f32 %v784, %v925
        %v927 = vpop.f32.mrb[0].mxu0
        %v928 = vadd.f32 %v788, %v927
        %v929 = vpop.f32.mrb[0].mxu0
        %v930 = vadd.f32 %v784, %v929
        %v931 = vpop.f32.mrb[0].mxu0
        %v932 = vadd.f32 %v788, %v931
        %933 = vmatprep.mubr.bf16.mxu0 0
        %934 = vmatmul.mubr.bf16.gmra.mrb[0].mxu0 %v758
        %v935 = vpop.f32.mrb[0].mxu0
        %v936 = vadd.f32 %v784, %v935
        %v937 = vpop.f32.mrb[0].mxu0
        %v938 = vadd.f32 %v788, %v937
        %v939 = vpop.f32.mrb[0].mxu0
        %v940 = vadd.f32 %v784, %v939
        %v941 = vpop.f32.mrb[0].mxu0
        %v942 = vadd.f32 %v788, %v941
        %943 = vmatprep.mubr.bf16.mxu0 0
        %944 = vmatmul.mubr.bf16.gmra.mrb[0].mxu0 %v759
        %v945 = vpop.f32.mrb[0].mxu0
        %v946 = vadd.f32 %v784, %v945
        %v947 = vpop.f32.mrb[0].mxu0
        %v948 = vadd.f32 %v788, %v947
        %v949 = vpop.f32.mrb[0].mxu0
        %v950 = vadd.f32 %v784, %v949
        %v951 = vpop.f32.mrb[0].mxu0
        %v952 = vadd.f32 %v788, %v951
        %953 = vmatprep.mubr.bf16.mxu0 0
        %954 = vmatmul.mubr.bf16.gmra.mrb[0].mxu0 %v760
        %v955 = vpop.f32.mrb[0].mxu0
        %v956 = vadd.f32 %v784, %v955
        %v957 = vpop.f32.mrb[0].mxu0
        %v958 = vadd.f32 %v788, %v957
        %v959 = vpop.f32.mrb[0].mxu0
        %v960 = vadd.f32 %v784, %v959
        %v961 = vpop.f32.mrb[0].mxu0
        %v962 = vadd.f32 %v788, %v961
        %963 = vmatprep.mubr.bf16.mxu0 0
        %964 = vmatmul.mubr.bf16.gmra.mrb[0].mxu0 %v761
        %v965 = vpop.f32.mrb[0].mxu0
        %v966 = vadd.f32 %v784, %v965
        %v967 = vpop.f32.mrb[0].mxu0
        %v968 = vadd.f32 %v788, %v967
        %v969 = vpop.f32.mrb[0].mxu0
        %v970 = vadd.f32 %v784, %v969
        %v971 = vpop.f32.mrb[0].mxu0
        %v972 = vadd.f32 %v788, %v971
        %973 = vmatprep.mubr.bf16.mxu0 0
        %974 = vmatmul.mubr.bf16.gmra.mrb[0].mxu0 %v762
        %v975 = vpop.f32.mrb[0].mxu0
        %v976 = vadd.f32 %v784, %v975
        %v977 = vpop.f32.mrb[0].mxu0
        %v978 = vadd.f32 %v788, %v977
        %v979 = vpop.f32.mrb[0].mxu0
        %v980 = vadd.f32 %v784, %v979
        %v981 = vpop.f32.mrb[0].mxu0
        %v982 = vadd.f32 %v788, %v981
        %983 = vdwg.mxu0
        %v984 = vmax.f32 %v906, 0.0
        %v985 = vmax.f32 %v908, 0.0
        %v986 = vmax.f32 %v910, 0.0
        %v987 = vmax.f32 %v912, 0.0
        %v988 = vmax.f32 %v916, 0.0
        %v989 = vmax.f32 %v918, 0.0
        %v990 = vmax.f32 %v920, 0.0
        %v991 = vmax.f32 %v922, 0.0
        %v992 = vmax.f32 %v926, 0.0
        %v993 = vmax.f32 %v928, 0.0
        %v994 = vmax.f32 %v930, 0.0
        %v995 = vmax.f32 %v932, 0.0
        %v996 = vmax.f32 %v936, 0.0
        %v997 = vmax.f32 %v938, 0.0
        %v998 = vmax.f32 %v940, 0.0
        %v999 = vmax.f32 %v942, 0.0
        %v1000 = vmax.f32 %v946, 0.0
        %v1001 = vmax.f32 %v948, 0.0
        %v1002 = vmax.f32 %v950, 0.0
        %v1003 = vmax.f32 %v952, 0.0
        %v1004 = vmax.f32 %v956, 0.0
        %v1005 = vmax.f32 %v958, 0.0
        %v1006 = vmax.f32 %v960, 0.0
        %v1007 = vmax.f32 %v962, 0.0
        %v1008 = vmax.f32 %v966, 0.0
        %v1009 = vmax.f32 %v968, 0.0
        %v1010 = vmax.f32 %v970, 0.0
        %v1011 = vmax.f32 %v972, 0.0
        %v1012 = vmax.f32 %v976, 0.0
        %v1013 = vmax.f32 %v978, 0.0
        %v1014 = vmax.f32 %v980, 0.0
        %v1015 = vmax.f32 %v982, 0.0
        %v1016 = vpack.c.bf16 %v986, %v984
        %v1017 = vpack.c.bf16 %v987, %v985
        %v1018 = vpack.c.bf16 %v990, %v988
        %v1019 = vpack.c.bf16 %v991, %v989
        %v1020 = vpack.c.bf16 %v994, %v992
        %v1021 = vpack.c.bf16 %v995, %v993
        %v1022 = vpack.c.bf16 %v998, %v996
        %v1023 = vpack.c.bf16 %v999, %v997
        %v1024 = vpack.c.bf16 %v1002, %v1000
        %v1025 = vpack.c.bf16 %v1003, %v1001
        %v1026 = vpack.c.bf16 %v1006, %v1004
        %v1027 = vpack.c.bf16 %v1007, %v1005
        %v1028 = vpack.c.bf16 %v1010, %v1008
        %v1029 = vpack.c.bf16 %v1011, %v1009
        %v1030 = vpack.c.bf16 %v1014, %v1012
        %v1031 = vpack.c.bf16 %v1015, %v1013
        %v1032 = vld [vmem:[%s6] sm:$0xf]
        %v1033 = vld [vmem:[%s6 + $0x4] sm:$0xf]
        %v1034 = vld [vmem:[%s6 + $0x8] sm:$0xf]
        %v1035 = vld [vmem:[%s6 + $0xc] sm:$0xf]
        %v1036 = vld [vmem:[%s6 + $0x10] sm:$0xf]
        %v1037 = vld [vmem:[%s6 + $0x14] sm:$0xf]
        %v1038 = vld [vmem:[%s6 + $0x18] sm:$0xf]
        %v1039 = vld [vmem:[%s6 + $0x1c] sm:$0xf]
        %v1040 = vld [vmem:[%s6 + $0x20] sm:$0xf]
        %v1041 = vld [vmem:[%s6 + $0x24] sm:$0xf]
        %v1042 = vld [vmem:[%s6 + $0x28] sm:$0xf]
        %v1043 = vld [vmem:[%s6 + $0x2c] sm:$0xf]
        %v1044 = vld [vmem:[%s6 + $0x30] sm:$0xf]
        %v1045 = vld [vmem:[%s6 + $0x34] sm:$0xf]
        %v1046 = vld [vmem:[%s6 + $0x38] sm:$0xf]
        %v1047 = vld [vmem:[%s6 + $0x3c] sm:$0xf]
        %v1048 = vld [vmem:[%s6 + $0x40] sm:$0xf]
        %v1049 = vld [vmem:[%s6 + $0x44] sm:$0xf]
        %v1050 = vld [vmem:[%s6 + $0x48] sm:$0xf]
        %v1051 = vld [vmem:[%s6 + $0x4c] sm:$0xf]
        %v1052 = vld [vmem:[%s6 + $0x50] sm:$0xf]
        %v1053 = vld [vmem:[%s6 + $0x54] sm:$0xf]
        %v1054 = vld [vmem:[%s6 + $0x58] sm:$0xf]
        %v1055 = vld [vmem:[%s6 + $0x5c] sm:$0xf]
        %v1056 = vld [vmem:[%s6 + $0x60] sm:$0xf]
        %v1057 = vld [vmem:[%s6 + $0x64] sm:$0xf]
        %v1058 = vld [vmem:[%s6 + $0x68] sm:$0xf]
        %v1059 = vld [vmem:[%s6 + $0x6c] sm:$0xf]
        %v1060 = vld [vmem:[%s6 + $0x70] sm:$0xf]
        %v1061 = vld [vmem:[%s6 + $0x74] sm:$0xf]
        %v1062 = vld [vmem:[%s6 + $0x78] sm:$0xf]
        %v1063 = vld [vmem:[%s6 + $0x7c] sm:$0xf]
        %v1096 = vunpack.c.l.b16 %v1032
        %v1097 = vunpack.c.l.b16 %v1033
        %v1098 = vunpack.c.l.b16 %v1034
        %v1099 = vunpack.c.l.b16 %v1035
        %v1100 = vunpack.c.l.b16 %v1036
        %v1101 = vunpack.c.l.b16 %v1037
        %v1102 = vunpack.c.l.b16 %v1038
        %v1103 = vunpack.c.l.b16 %v1039
        %v1104 = vunpack.c.l.b16 %v1040
        %v1105 = vunpack.c.l.b16 %v1041
        %v1106 = vunpack.c.l.b16 %v1042
        %v1107 = vunpack.c.l.b16 %v1043
        %v1108 = vunpack.c.l.b16 %v1044
        %v1109 = vunpack.c.l.b16 %v1045
        %v1110 = vunpack.c.l.b16 %v1046
        %v1111 = vunpack.c.l.b16 %v1047
        %v1112 = vunpack.c.l.b16 %v1048
        %v1113 = vunpack.c.l.b16 %v1049
        %v1114 = vunpack.c.l.b16 %v1050
        %v1115 = vunpack.c.l.b16 %v1051
        %v1116 = vunpack.c.l.b16 %v1052
        %v1117 = vunpack.c.l.b16 %v1053
        %v1118 = vunpack.c.l.b16 %v1054
        %v1119 = vunpack.c.l.b16 %v1055
        %v1120 = vunpack.c.l.b16 %v1056
        %v1121 = vunpack.c.l.b16 %v1057
        %v1122 = vunpack.c.l.b16 %v1058
        %v1123 = vunpack.c.l.b16 %v1059
        %v1124 = vunpack.c.l.b16 %v1060
        %v1125 = vunpack.c.l.b16 %v1061
        %v1126 = vunpack.c.l.b16 %v1062
        %v1127 = vunpack.c.l.b16 %v1063
        %v1128 = vpack.c.b16 %v1097, %v1096
        %v1129 = vpack.c.b16 %v1099, %v1098
        %v1130 = vpack.c.b16 %v1101, %v1100
        %v1131 = vpack.c.b16 %v1103, %v1102
        %v1132 = vpack.c.b16 %v1105, %v1104
        %v1133 = vpack.c.b16 %v1107, %v1106
        %v1134 = vpack.c.b16 %v1109, %v1108
        %v1135 = vpack.c.b16 %v1111, %v1110
        %v1136 = vpack.c.b16 %v1113, %v1112
        %v1137 = vpack.c.b16 %v1115, %v1114
        %v1138 = vpack.c.b16 %v1117, %v1116
        %v1139 = vpack.c.b16 %v1119, %v1118
        %v1140 = vpack.c.b16 %v1121, %v1120
        %v1141 = vpack.c.b16 %v1123, %v1122
        %v1142 = vpack.c.b16 %v1125, %v1124
        %v1143 = vpack.c.b16 %v1127, %v1126
        %1160 = vmatprep.subr.bf16.mxu0 0
        %1161 = vmatpush1.bf16.msra.mxu0 %v1128
        %1162 = vmatprep.subr.bf16.mxu0 0
        %1163 = vmatpush1.bf16.msra.mxu0 %v1129
        %1164 = vmatprep.subr.bf16.mxu0 0
        %1165 = vmatpush1.bf16.msra.mxu0 %v1130
        %1166 = vmatprep.subr.bf16.mxu0 0
        %1167 = vmatpush1.bf16.msra.mxu0 %v1131
        %1168 = vmatprep.subr.bf16.mxu0 0
        %1169 = vmatpush1.bf16.msra.mxu0 %v1132
        %1170 = vmatprep.subr.bf16.mxu0 0
        %1171 = vmatpush1.bf16.msra.mxu0 %v1133
        %1172 = vmatprep.subr.bf16.mxu0 0
        %1173 = vmatpush1.bf16.msra.mxu0 %v1134
        %1174 = vmatprep.subr.bf16.mxu0 0
        %1175 = vmatpush1.bf16.msra.mxu0 %v1135
        %1176 = vmatprep.subr.bf16.mxu0 0
        %1177 = vmatpush1.bf16.msra.mxu0 %v1136
        %1178 = vmatprep.subr.bf16.mxu0 0
        %1179 = vmatpush1.bf16.msra.mxu0 %v1137
        %1180 = vmatprep.subr.bf16.mxu0 0
        %1181 = vmatpush1.bf16.msra.mxu0 %v1138
        %1182 = vmatprep.subr.bf16.mxu0 0
        %1183 = vmatpush1.bf16.msra.mxu0 %v1139
        %1184 = vmatprep.subr.bf16.mxu0 0
        %1185 = vmatpush1.bf16.msra.mxu0 %v1140
        %1186 = vmatprep.subr.bf16.mxu0 0
        %1187 = vmatpush1.bf16.msra.mxu0 %v1141
        %1188 = vmatprep.subr.bf16.mxu0 0
        %1189 = vmatpush1.bf16.msra.mxu0 %v1142
        %1190 = vmatprep.subr.bf16.mxu0 0
        %1191 = vmatpush1.bf16.msra.mxu0 %v1143
        %1192 = vmatprep.mubr.bf16.mxu0 %v1017
        %1193 = vmatmul.mubr.bf16.gmra.mrb[0].mxu0 %v1016
        %v1194 = vpop.f32.mrb[0].mxu0
        %v1195 = vadd.f32 0.0, %v1194
        %v1196 = vpop.f32.mrb[0].mxu0
        %v1197 = vpop.f32.mrb[0].mxu0
        %v1198 = vadd.f32 0.0, %v1197
        %v1199 = vpop.f32.mrb[0].mxu0
        %1200 = vmatprep.mubr.bf16.mxu0 %v1019
        %1201 = vmatmul.mubr.bf16.gmra.mrb[0].mxu0 %v1018
        %v1202 = vpop.f32.mrb[0].mxu0
        %v1203 = vadd.f32 0.0, %v1202
        %v1204 = vpop.f32.mrb[0].mxu0
        %v1205 = vpop.f32.mrb[0].mxu0
        %v1206 = vadd.f32 0.0, %v1205
        %v1207 = vpop.f32.mrb[0].mxu0
        %1208 = vmatprep.mubr.bf16.mxu0 %v1021
        %1209 = vmatmul.mubr.bf16.gmra.mrb[0].mxu0 %v1020
        %v1210 = vpop.f32.mrb[0].mxu0
        %v1211 = vadd.f32 0.0, %v1210
        %v1212 = vpop.f32.mrb[0].mxu0
        %v1213 = vpop.f32.mrb[0].mxu0
        %v1214 = vadd.f32 0.0, %v1213
        %v1215 = vpop.f32.mrb[0].mxu0
        %1216 = vmatprep.mubr.bf16.mxu0 %v1023
        %1217 = vmatmul.mubr.bf16.gmra.mrb[0].mxu0 %v1022
        %v1218 = vpop.f32.mrb[0].mxu0
        %v1219 = vadd.f32 0.0, %v1218
        %v1220 = vpop.f32.mrb[0].mxu0
        %v1221 = vpop.f32.mrb[0].mxu0
        %v1222 = vadd.f32 0.0, %v1221
        %v1223 = vpop.f32.mrb[0].mxu0
        %1224 = vmatprep.mubr.bf16.mxu0 %v1025
        %1225 = vmatmul.mubr.bf16.gmra.mrb[0].mxu0 %v1024
        %v1226 = vpop.f32.mrb[0].mxu0
        %v1227 = vadd.f32 0.0, %v1226
        %v1228 = vpop.f32.mrb[0].mxu0
        %v1229 = vpop.f32.mrb[0].mxu0
        %v1230 = vadd.f32 0.0, %v1229
        %v1231 = vpop.f32.mrb[0].mxu0
        %1232 = vmatprep.mubr.bf16.mxu0 %v1027
        %1233 = vmatmul.mubr.bf16.gmra.mrb[0].mxu0 %v1026
        %v1234 = vpop.f32.mrb[0].mxu0
        %v1235 = vadd.f32 0.0, %v1234
        %v1236 = vpop.f32.mrb[0].mxu0
        %v1237 = vpop.f32.mrb[0].mxu0
        %v1238 = vadd.f32 0.0, %v1237
        %v1239 = vpop.f32.mrb[0].mxu0
        %1240 = vmatprep.mubr.bf16.mxu0 %v1029
        %1241 = vmatmul.mubr.bf16.gmra.mrb[0].mxu0 %v1028
        %v1242 = vpop.f32.mrb[0].mxu0
        %v1243 = vadd.f32 0.0, %v1242
        %v1244 = vpop.f32.mrb[0].mxu0
        %v1245 = vpop.f32.mrb[0].mxu0
        %v1246 = vadd.f32 0.0, %v1245
        %v1247 = vpop.f32.mrb[0].mxu0
        %1248 = vmatprep.mubr.bf16.mxu0 %v1031
        %1249 = vmatmul.mubr.bf16.gmra.mrb[0].mxu0 %v1030
        %v1250 = vpop.f32.mrb[0].mxu0
        %v1251 = vadd.f32 0.0, %v1250
        %v1252 = vpop.f32.mrb[0].mxu0
        %v1253 = vpop.f32.mrb[0].mxu0
        %v1254 = vadd.f32 0.0, %v1253
        %v1255 = vpop.f32.mrb[0].mxu0
        %1256 = vdwg.mxu0
        %v1257 = vld [vmem:[%s363] sm:$0xff]
        %v1258 = vld [vmem:[%s363 + $0x8] sm:$0xff]
        %v1259 = vld [vmem:[%s363 + $0x10] sm:$0xff]
        %v1260 = vld [vmem:[%s363 + $0x18] sm:$0xff]
        %v1261 = vld [vmem:[%s363 + $0x20] sm:$0xff]
        %v1262 = vld [vmem:[%s363 + $0x28] sm:$0xff]
        %v1263 = vld [vmem:[%s363 + $0x30] sm:$0xff]
        %v1264 = vld [vmem:[%s363 + $0x38] sm:$0xff]
        %v1265 = vld [vmem:[%s363 + $0x40] sm:$0xff]
        %v1266 = vld [vmem:[%s363 + $0x48] sm:$0xff]
        %v1267 = vld [vmem:[%s363 + $0x50] sm:$0xff]
        %v1268 = vld [vmem:[%s363 + $0x58] sm:$0xff]
        %v1269 = vld [vmem:[%s363 + $0x60] sm:$0xff]
        %v1270 = vld [vmem:[%s363 + $0x68] sm:$0xff]
        %v1271 = vld [vmem:[%s363 + $0x70] sm:$0xff]
        %v1272 = vld [vmem:[%s363 + $0x78] sm:$0xff]
        %1274 = vset.pattern.permute.xlu0 0
        %1275 = vperm.xlu0 %1274, %v1257
        %v1276 = vpop.permute.xlu0 %1275
        %1279 = vset.pattern.permute.xlu0 0
        %1280 = vperm.xlu0 %1279, %v1258
        %v1281 = vpop.permute.xlu0 %1280
        %1284 = vset.pattern.permute.xlu0 0
        %1285 = vperm.xlu0 %1284, %v1259
        %v1286 = vpop.permute.xlu0 %1285
        %1289 = vset.pattern.permute.xlu0 0
        %1290 = vperm.xlu0 %1289, %v1260
        %v1291 = vpop.permute.xlu0 %1290
        %1294 = vset.pattern.permute.xlu0 0
        %1295 = vperm.xlu0 %1294, %v1261
        %v1296 = vpop.permute.xlu0 %1295
        %1299 = vset.pattern.permute.xlu0 0
        %1300 = vperm.xlu0 %1299, %v1262
        %v1301 = vpop.permute.xlu0 %1300
        %1304 = vset.pattern.permute.xlu0 0
        %1305 = vperm.xlu0 %1304, %v1263
        %v1306 = vpop.permute.xlu0 %1305
        %1309 = vset.pattern.permute.xlu0 0
        %1310 = vperm.xlu0 %1309, %v1264
        %v1311 = vpop.permute.xlu0 %1310
        %1314 = vset.pattern.permute.xlu0 0
        %1315 = vperm.xlu0 %1314, %v1265
        %v1316 = vpop.permute.xlu0 %1315
        %1319 = vset.pattern.permute.xlu0 0
        %1320 = vperm.xlu0 %1319, %v1266
        %v1321 = vpop.permute.xlu0 %1320
        %1324 = vset.pattern.permute.xlu0 0
        %1325 = vperm.xlu0 %1324, %v1267
        %v1326 = vpop.permute.xlu0 %1325
        %1329 = vset.pattern.permute.xlu0 0
        %1330 = vperm.xlu0 %1329, %v1268
        %v1331 = vpop.permute.xlu0 %1330
        %1334 = vset.pattern.permute.xlu0 0
        %1335 = vperm.xlu0 %1334, %v1269
        %v1336 = vpop.permute.xlu0 %1335
        %1339 = vset.pattern.permute.xlu0 0
        %1340 = vperm.xlu0 %1339, %v1270
        %v1341 = vpop.permute.xlu0 %1340
        %1344 = vset.pattern.permute.xlu0 0
        %1345 = vperm.xlu0 %1344, %v1271
        %v1346 = vpop.permute.xlu0 %1345
        %1349 = vset.pattern.permute.xlu0 0
        %1350 = vperm.xlu0 %1349, %v1272
        %v1351 = vpop.permute.xlu0 %1350
        %v1353 = vmul.f32 %v1276, %v1195
        %v1354 = vmul.f32 %v1281, %v1198
        %v1355 = vmul.f32 %v1286, %v1203
        %v1356 = vmul.f32 %v1291, %v1206
        %v1357 = vmul.f32 %v1296, %v1211
        %v1358 = vmul.f32 %v1301, %v1214
        %v1359 = vmul.f32 %v1306, %v1219
        %v1360 = vmul.f32 %v1311, %v1222
        %v1361 = vmul.f32 %v1316, %v1227
        %v1362 = vmul.f32 %v1321, %v1230
        %v1363 = vmul.f32 %v1326, %v1235
        %v1364 = vmul.f32 %v1331, %v1238
        %v1365 = vmul.f32 %v1336, %v1243
        %v1366 = vmul.f32 %v1341, %v1246
        %v1367 = vmul.f32 %v1346, %v1251
        %v1368 = vmul.f32 %v1351, %v1254
        %v1369 = vadd.f32 %v1353, %v1354
        %v1370 = vrot.slane %v1369, 4
        %v1371 = vadd.f32 %v1369, %v1370
        %v1372 = vrot.slane %v1371, 2
        %v1373 = vadd.f32 %v1371, %v1372
        %v1374 = vrot.slane %v1373, 1
        %v1375 = vadd.f32 %v1373, %v1374
        %v1376 = vadd.f32 %v1355, %v1356
        %v1377 = vrot.slane %v1376, 4
        %v1378 = vadd.f32 %v1376, %v1377
        %v1379 = vrot.slane %v1378, 2
        %v1380 = vadd.f32 %v1378, %v1379
        %v1381 = vrot.slane %v1380, 1
        %v1382 = vadd.f32 %v1380, %v1381
        %v1383 = vadd.f32 %v1357, %v1358
        %v1384 = vrot.slane %v1383, 4
        %v1385 = vadd.f32 %v1383, %v1384
        %v1386 = vrot.slane %v1385, 2
        %v1387 = vadd.f32 %v1385, %v1386
        %v1388 = vrot.slane %v1387, 1
        %v1389 = vadd.f32 %v1387, %v1388
        %v1390 = vadd.f32 %v1359, %v1360
        %v1391 = vrot.slane %v1390, 4
        %v1392 = vadd.f32 %v1390, %v1391
        %v1393 = vrot.slane %v1392, 2
        %v1394 = vadd.f32 %v1392, %v1393
        %v1395 = vrot.slane %v1394, 1
        %v1396 = vadd.f32 %v1394, %v1395
        %v1397 = vadd.f32 %v1361, %v1362
        %v1398 = vrot.slane %v1397, 4
        %v1399 = vadd.f32 %v1397, %v1398
        %v1400 = vrot.slane %v1399, 2
        %v1401 = vadd.f32 %v1399, %v1400
        %v1402 = vrot.slane %v1401, 1
        %v1403 = vadd.f32 %v1401, %v1402
        %v1404 = vadd.f32 %v1363, %v1364
        %v1405 = vrot.slane %v1404, 4
        %v1406 = vadd.f32 %v1404, %v1405
        %v1407 = vrot.slane %v1406, 2
        %v1408 = vadd.f32 %v1406, %v1407
        %v1409 = vrot.slane %v1408, 1
        %v1410 = vadd.f32 %v1408, %v1409
        %v1411 = vadd.f32 %v1365, %v1366
        %v1412 = vrot.slane %v1411, 4
        %v1413 = vadd.f32 %v1411, %v1412
        %v1414 = vrot.slane %v1413, 2
        %v1415 = vadd.f32 %v1413, %v1414
        %v1416 = vrot.slane %v1415, 1
        %v1417 = vadd.f32 %v1415, %v1416
        %v1418 = vadd.f32 %v1367, %v1368
        %v1419 = vrot.slane %v1418, 4
        %v1420 = vadd.f32 %v1418, %v1419
        %v1421 = vrot.slane %v1420, 2
        %v1422 = vadd.f32 %v1420, %v1421
        %v1423 = vrot.slane %v1422, 1
        %v1424 = vadd.f32 %v1422, %v1423
        %v1425 = vld [vmem:[%s7] sm:$0x1]
        %v1427 = vlaneseq
        %v1428 = vshrl.u32 %v1427, 7
        %v1429 = vsub.s32 0, %v1428
        %v1430 = vrot.slane %v1425, %v1429
        %v1432 = vadd.f32 %v1375, %v1430
        %v1433 = vadd.f32 %v1382, %v1430
        %v1434 = vadd.f32 %v1389, %v1430
        %v1435 = vadd.f32 %v1396, %v1430
        %v1436 = vadd.f32 %v1403, %v1430
        %v1437 = vadd.f32 %v1410, %v1430
        %v1438 = vadd.f32 %v1417, %v1430
        %v1439 = vadd.f32 %v1424, %v1430
        %v1448 = vrot.slane %v1433, 7
        %vm1449 = vcmask 1041409
        %v1450 = vsel %vm1449, %v1448, %v1432
        %v1451 = vrot.slane %v1434, 6
        %vm1452 = vcmask 1042434
        %v1453 = vsel %vm1452, %v1451, %v1450
        %v1454 = vrot.slane %v1435, 5
        %vm1455 = vcmask 1043459
        %v1456 = vsel %vm1455, %v1454, %v1453
        %v1457 = vrot.slane %v1436, 4
        %vm1458 = vcmask 1044484
        %v1459 = vsel %vm1458, %v1457, %v1456
        %v1460 = vrot.slane %v1437, 3
        %vm1461 = vcmask 1045509
        %v1462 = vsel %vm1461, %v1460, %v1459
        %v1463 = vrot.slane %v1438, 2
        %vm1464 = vcmask 1046534
        %v1465 = vsel %vm1464, %v1463, %v1462
        %v1466 = vrot.slane %v1439, 1
        %vm1467 = vcmask 1047559
        %v1468 = vsel %vm1467, %v1466, %v1465
        %1470 = vst [vmem:[%s343] sm:$0xff] %v1468
        %s1471 = sand.u32 %s218, 1
        %s1472 = scalar_lea.sflag [#allocation4], %s1471
        %s1473 = sand.u32 %s218, 1
        %s1474 = smul.addr %s1473, 8
        %s1475 = scalar_lea.vmem [#allocation3], %s1474
        // Predicated region
        $region53: #{gcn_forward.1} parent=51 // pred_check
          %p1476 = pneg %p228
        $region54: #{gcn_forward.1} parent=51 // pred_check_branch
          %1478 = sbr.rel (%p1476) target = $region56
        $region55: #{gcn_forward.1} parent=51 // pred_region
          %s1480 = ssub.s32 128, 128
          %1481 = vsyncadd %s1472, %s1480
          %s1482 = smul.addr %s22, 128
          %s1483 = scalar_lea.hbm %s8, %s1482
          %s1485 = sshll.u32 %s1475, 4
          %s1486 = int_to_ptr.vmem [resolvable:$true] %s1485
          %1488 = dma.vmem_to_hbm [thread:$0]  %s1486, 128, %s1483, %s1472
        $region56: #{gcn_forward.1} parent=51 // pred_fallthru
          _
      $region52: #{gcn_forward.1} parent=5 // pred_fallthru
        _
      %p1489 = scmp.le.s32.totalorder 2, %s17
      // Predicated region
      $region57: #{gcn_forward.1} parent=5 // pred_check
        %p1490 = pneg %p1489
      $region58: #{gcn_forward.1} parent=5 // pred_check_branch
        %1492 = sbr.rel (%p1490) target = $region60
      $region59: #{gcn_forward.1} parent=5 // pred_region
        %s1493 = ssub.s32 %s17, 2
        // Predicated region
        $region61: #{gcn_forward.1} parent=59 // pred_check
          %p1494 = pneg %p234
        $region62: #{gcn_forward.1} parent=59 // pred_check_branch
          %1496 = sbr.rel (%p1494) target = $region64
        $region63: #{gcn_forward.1} parent=59 // pred_region
          %s1497 = sand.u32 %s219, 1
          %s1498 = scalar_lea.sflag [#allocation4], %s1497
          %s1499 = sand.u32 %s219, 1
          %s1500 = smul.addr %s1499, 8
          %s1501 = scalar_lea.vmem [#allocation3], %s1500
          %1502 = dma.done %s1498, 128
        $region64: #{gcn_forward.1} parent=59 // pred_fallthru
          _
      $region60: #{gcn_forward.1} parent=5 // pred_fallthru
        _
    $region6: #{gcn_forward.1} parent=1 // loop_footer
      %s21 = sadd.s32 1, %s17
    $region7: #{gcn_forward.1} parent=1 // loop_footer_branch
      %16 = sbr.rel target = $region3
    $region8: #{gcn_forward.1} parent=1 // loop_exit
      _
    %1503 = vsyncpa [#allocation4], 1
    %s1504 = scalar_lea.sflag [#allocation4], 1
    %1505 = vsyncpa %s1504, 1

</llo_original>
